<compile_context>
chip_gen: v5e
topology: v5e:2x2
jax: 0.10.0
libtpu: 0.0.40
codegen_flags: <defaults>
</compile_context>

<pallas_src>
import functools

import jax
import jax.numpy as jnp
from jax.experimental import pallas as pl
from jax.experimental.pallas import tpu as pltpu


_LANE = 128  # TPU lane width; output slabs are padded to multiples of this.


def _round_up(x, m):
    return (x + m - 1) // m * m


def _mlp_kernel(x_ref, w1_ref, b1_ref, w2_ref, b2_ref, w3_ref, b3_ref,
                feat_ref, logit_ref):
    """One batch tile: 3 matmuls (bf16 in, f32 acc) + ReLUs, lane-dense stores."""
    x = x_ref[...]                                                     # (TM, 3072) bf16

    # layer1: Linear(3072 -> 64) + ReLU
    h1 = jnp.dot(x, w1_ref[...], preferred_element_type=jnp.float32)
    h1 = jnp.maximum(h1 + b1_ref[...], 0.0)                            # (TM, 64) f32

    # layer2: Linear(64 -> 32, zero-padded to 128) + ReLU -> "features"
    feats = jnp.dot(h1.astype(w2_ref.dtype), w2_ref[...],
                    preferred_element_type=jnp.float32)
    feats = jnp.maximum(feats + b2_ref[...], 0.0)                      # (TM, 128); cols >= 32 are 0

    # classifier: Linear(32 -> n_classes, zero-padded to C_pad) -> "logits"
    logits = jnp.dot(feats.astype(w3_ref.dtype), w3_ref[...],
                     preferred_element_type=jnp.float32) + b3_ref[...]  # (TM, C_pad)

    feat_ref[...] = feats.astype(feat_ref.dtype)
    logit_ref[...] = logits.astype(logit_ref.dtype)


@functools.partial(jax.jit, static_argnames=("n_classes", "block_m", "compute_dtype"))
def first_model_omniglot_forward(x_nchw, params, *, n_classes,
                                 block_m=256, compute_dtype=jnp.bfloat16):
    """x_nchw: (B, 3, 32, 32) float32. Returns (features, logits, prob, y_hat)."""
    w1, b1, w2, b2, w3, b3 = params
    d_in, h1_dim = w1.shape          # (3072, 64)
    feat_dim = w2.shape[1]           # 32

    b = x_nchw.shape[0]
    x2d = x_nchw.reshape(b, -1).astype(compute_dtype)                  # (B, 3072), torch-style row-major flatten

    # Batch tiling: TM multiple of 8, pad B up so the grid divides evenly.
    tm = min(block_m, _round_up(b, 8))
    b_pad = _round_up(b, tm)
    if b_pad != b:
        x2d = jnp.pad(x2d, ((0, b_pad - b), (0, 0)))
    grid = (b_pad // tm,)

    # Lane-dense padding of the small layers (zero cols/rows contribute nothing).
    feat_pad = _LANE                                                   # 32 -> 128
    c_pad = _round_up(max(n_classes, 1), _LANE)                        # n_classes -> multiple of 128

    w1c = w1.astype(compute_dtype)
    b1r = b1.reshape(1, -1).astype(jnp.float32)                        # (1, 64)
    w2p = jnp.pad(w2, ((0, 0), (0, feat_pad - feat_dim))).astype(compute_dtype)          # (64, 128)
    b2p = jnp.pad(b2, (0, feat_pad - feat_dim)).reshape(1, -1).astype(jnp.float32)        # (1, 128)
    w3p = jnp.pad(w3, ((0, feat_pad - feat_dim),
                       (0, c_pad - n_classes))).astype(compute_dtype)                     # (128, C_pad)
    b3p = jnp.pad(b3, (0, c_pad - n_classes)).reshape(1, -1).astype(jnp.float32)          # (1, C_pad)

    const = lambda i: (0, 0)   # resident weights: same block every grid step
    out_shapes = (
        jax.ShapeDtypeStruct((b_pad, feat_pad), jnp.float32),          # padded features
        jax.ShapeDtypeStruct((b_pad, c_pad), jnp.float32),             # padded logits
    )

    feats_p, logits_p = pl.pallas_call(
        _mlp_kernel,
        out_shape=out_shapes,
        grid=grid,
        in_specs=[
            pl.BlockSpec((tm, d_in), lambda i: (i, 0)),                # x tile (pipelined)
            pl.BlockSpec((d_in, h1_dim), const),                       # w1
            pl.BlockSpec((1, h1_dim), const),                          # b1
            pl.BlockSpec((h1_dim, feat_pad), const),                   # w2 (padded)
            pl.BlockSpec((1, feat_pad), const),                        # b2 (padded)
            pl.BlockSpec((feat_pad, c_pad), const),                    # w3 (padded)
            pl.BlockSpec((1, c_pad), const),                           # b3 (padded)
        ],
        out_specs=(
            pl.BlockSpec((tm, feat_pad), lambda i: (i, 0)),
            pl.BlockSpec((tm, c_pad), lambda i: (i, 0)),
        ),
        compiler_params=pltpu.CompilerParams(
            dimension_semantics=("parallel",),
        ),
    )(x2d, w1c, b1r, w2p, b2p, w3p, b3p)

    features = feats_p[:b, :feat_dim]
    logits = logits_p[:b, :n_classes]

    # Hoisted full-batch ops (match torch semantics on the logits):
    prob = jax.nn.softmax(logits, axis=0)                              # F.softmax(logits, dim=0)
    # torch.topk(logits, 1, dim=1)[1]  -> argmax over classes.
    # TODO(synk): torch returns int64 indices; JAX default is int32 here.
    y_hat = jnp.argmax(logits, axis=1, keepdims=True).astype(jnp.int32)

    return features, logits, prob, y_hat


def init_params(key, n_classes):
    """Deterministic synthetic params (same shapes as the torch module)."""
    k1, k2, k3, k4, k5, k6 = jax.random.split(key, 6)
    d_in = 32 * 32 * 3
    w1 = jax.random.normal(k1, (d_in, 64), jnp.float32) * (1.0 / jnp.sqrt(d_in))
    b1 = jax.random.normal(k2, (64,), jnp.float32) * 0.01
    w2 = jax.random.normal(k3, (64, 32), jnp.float32) * (1.0 / jnp.sqrt(64.0))
    b2 = jax.random.normal(k4, (32,), jnp.float32) * 0.01
    w3 = jax.random.normal(k5, (32, n_classes), jnp.float32) * (1.0 / jnp.sqrt(32.0))
    b3 = jax.random.normal(k6, (n_classes,), jnp.float32) * 0.01
    return (w1, b1, w2, b2, w3, b3)


def _reference(x_nchw, params, compute_dtype=jnp.bfloat16):
    """Pure-JAX reference mirroring the torch forward with matched bf16 casts."""
    w1, b1, w2, b2, w3, b3 = params
    x = x_nchw.reshape(x_nchw.shape[0], -1).astype(compute_dtype)
    h1 = jnp.maximum(
        jnp.dot(x, w1.astype(compute_dtype), preferred_element_type=jnp.float32) + b1, 0.0)
    feats = jnp.maximum(
        jnp.dot(h1.astype(compute_dtype), w2.astype(compute_dtype),
                preferred_element_type=jnp.float32) + b2, 0.0)
    logits = jnp.dot(feats.astype(compute_dtype), w3.astype(compute_dtype),
                     preferred_element_type=jnp.float32) + b3
    prob = jax.nn.softmax(logits, axis=0)
    y_hat = jnp.argmax(logits, axis=1, keepdims=True).astype(jnp.int32)
    return feats, logits, prob, y_hat


if __name__ == "__main__":
    N_CLASSES = 10
    B = 4

    key = jax.random.PRNGKey(0)
    kx, kp = jax.random.split(key)
    x = jax.random.normal(kx, (B, 3, 32, 32), jnp.float32)
    params = init_params(kp, N_CLASSES)

    feats, logits, prob, y_hat = first_model_omniglot_forward(x, params, n_classes=N_CLASSES)
    jax.block_until_ready((feats, logits, prob, y_hat))

    rf, rl, rp, ry = _reference(x, params)
    assert feats.shape == (B, 32) and logits.shape == (B, N_CLASSES)
    assert prob.shape == (B, N_CLASSES) and y_hat.shape == (B, 1)
    assert jnp.allclose(feats, rf, atol=1e-3, rtol=1e-3), "features mismatch"
    assert jnp.allclose(logits, rl, atol=1e-3, rtol=1e-3), "logits mismatch"
    assert jnp.allclose(prob, rp, atol=1e-3, rtol=1e-3), "prob mismatch"
    assert jnp.array_equal(y_hat, ry), "y_hat mismatch"

    print("KERNEL_OK")
</pallas_src>

<mosaic_0001>
module attributes {stable_mosaic.version = 11 : i64} {
  func.func @_mlp_kernel(%arg0: i32, %arg1: memref<8x3072xbf16, #tpu.memory_space<vmem>>, %arg2: memref<3072x64xbf16, #tpu.memory_space<vmem>>, %arg3: memref<1x64xf32, #tpu.memory_space<vmem>>, %arg4: memref<64x128xbf16, #tpu.memory_space<vmem>>, %arg5: memref<1x128xf32, #tpu.memory_space<vmem>>, %arg6: memref<128x128xbf16, #tpu.memory_space<vmem>>, %arg7: memref<1x128xf32, #tpu.memory_space<vmem>>, %arg8: memref<8x128xf32, #tpu.memory_space<vmem>>, %arg9: memref<8x128xf32, #tpu.memory_space<vmem>>) attributes {dimension_semantics = [#tpu.dimension_semantics<parallel>], iteration_bounds = array<i64: 1>, scalar_prefetch = 0 : i64, scratch_operands = 0 : i64, tpu.core_type = #tpu.core_type<tc>, window_params = [{transform_indices = @transform_0, window_bounds = array<i64: 8, 3072>}, {pipeline_mode = #tpu.pipeline_mode<synchronous>, transform_indices = @transform_1, window_bounds = array<i64: 3072, 64>}, {pipeline_mode = #tpu.pipeline_mode<synchronous>, transform_indices = @transform_2, window_bounds = array<i64: 1, 64>}, {pipeline_mode = #tpu.pipeline_mode<synchronous>, transform_indices = @transform_3, window_bounds = array<i64: 64, 128>}, {pipeline_mode = #tpu.pipeline_mode<synchronous>, transform_indices = @transform_4, window_bounds = array<i64: 1, 128>}, {pipeline_mode = #tpu.pipeline_mode<synchronous>, transform_indices = @transform_5, window_bounds = array<i64: 128, 128>}, {pipeline_mode = #tpu.pipeline_mode<synchronous>, transform_indices = @transform_6, window_bounds = array<i64: 1, 128>}, {transform_indices = @transform_7, window_bounds = array<i64: 8, 128>}, {transform_indices = @transform_8, window_bounds = array<i64: 8, 128>}]} {
    %c0 = arith.constant 0 : index
    %c0_0 = arith.constant 0 : index
    %0 = vector.load %arg1[%c0, %c0_0] : memref<8x3072xbf16, #tpu.memory_space<vmem>>, vector<8x3072xbf16>
    %c0_1 = arith.constant 0 : index
    %c0_2 = arith.constant 0 : index
    %1 = vector.load %arg2[%c0_1, %c0_2] : memref<3072x64xbf16, #tpu.memory_space<vmem>>, vector<3072x64xbf16>
    %cst = arith.constant dense<0.000000e+00> : vector<8x64xf32>
    %2 = tpu.matmul %0, %1, %cst {dimension_numbers = #tpu.dot_dimension_numbers<[1], [0], [0], [1], [0, 0, 1, 1], [], []>} : vector<8x3072xbf16>, vector<3072x64xbf16>, vector<8x64xf32> -> vector<8x64xf32>
    %c0_3 = arith.constant 0 : index
    %c0_4 = arith.constant 0 : index
    %3 = vector.load %arg3[%c0_3, %c0_4] : memref<1x64xf32, #tpu.memory_space<vmem>>, vector<1x64xf32>
    %4 = vector.broadcast %3 : vector<1x64xf32> to vector<8x64xf32>
    %5 = arith.addf %2, %4 : vector<8x64xf32>
    %cst_5 = arith.constant 0.000000e+00 : f32
    %6 = vector.broadcast %cst_5 : f32 to vector<8x64xf32>
    %7 = arith.maximumf %5, %6 : vector<8x64xf32>
    %8 = arith.truncf %7 : vector<8x64xf32> to vector<8x64xbf16>
    %c0_6 = arith.constant 0 : index
    %c0_7 = arith.constant 0 : index
    %9 = vector.load %arg4[%c0_6, %c0_7] : memref<64x128xbf16, #tpu.memory_space<vmem>>, vector<64x128xbf16>
    %cst_8 = arith.constant dense<0.000000e+00> : vector<8x128xf32>
    %10 = tpu.matmul %8, %9, %cst_8 {dimension_numbers = #tpu.dot_dimension_numbers<[1], [0], [0], [1], [0, 0, 1, 1], [], []>} : vector<8x64xbf16>, vector<64x128xbf16>, vector<8x128xf32> -> vector<8x128xf32>
    %c0_9 = arith.constant 0 : index
    %c0_10 = arith.constant 0 : index
    %11 = vector.load %arg5[%c0_9, %c0_10] : memref<1x128xf32, #tpu.memory_space<vmem>>, vector<1x128xf32>
    %12 = vector.broadcast %11 : vector<1x128xf32> to vector<8x128xf32>
    %13 = arith.addf %10, %12 : vector<8x128xf32>
    %cst_11 = arith.constant 0.000000e+00 : f32
    %14 = vector.broadcast %cst_11 : f32 to vector<8x128xf32>
    %15 = arith.maximumf %13, %14 : vector<8x128xf32>
    %16 = arith.truncf %15 : vector<8x128xf32> to vector<8x128xbf16>
    %c0_12 = arith.constant 0 : index
    %c0_13 = arith.constant 0 : index
    %17 = vector.load %arg6[%c0_12, %c0_13] : memref<128x128xbf16, #tpu.memory_space<vmem>>, vector<128x128xbf16>
    %cst_14 = arith.constant dense<0.000000e+00> : vector<8x128xf32>
    %18 = tpu.matmul %16, %17, %cst_14 {dimension_numbers = #tpu.dot_dimension_numbers<[1], [0], [0], [1], [0, 0, 1, 1], [], []>} : vector<8x128xbf16>, vector<128x128xbf16>, vector<8x128xf32> -> vector<8x128xf32>
    %c0_15 = arith.constant 0 : index
    %c0_16 = arith.constant 0 : index
    %19 = vector.load %arg7[%c0_15, %c0_16] : memref<1x128xf32, #tpu.memory_space<vmem>>, vector<1x128xf32>
    %20 = vector.broadcast %19 : vector<1x128xf32> to vector<8x128xf32>
    %21 = arith.addf %18, %20 : vector<8x128xf32>
    %c0_17 = arith.constant 0 : index
    %c0_18 = arith.constant 0 : index
    %22 = vector.load %arg8[%c0_17, %c0_18] : memref<8x128xf32, #tpu.memory_space<vmem>>, vector<8x128xf32>
    tpu.vector_store %arg8[%c0_17, %c0_18], %15 {strides = array<i32>} : memref<8x128xf32, #tpu.memory_space<vmem>>, vector<8x128xf32>,
    %c0_19 = arith.constant 0 : index
    %c0_20 = arith.constant 0 : index
    %23 = vector.load %arg9[%c0_19, %c0_20] : memref<8x128xf32, #tpu.memory_space<vmem>>, vector<8x128xf32>
    tpu.vector_store %arg9[%c0_19, %c0_20], %21 {strides = array<i32>} : memref<8x128xf32, #tpu.memory_space<vmem>>, vector<8x128xf32>,
    return
  }
  func.func @transform_0(%arg0: i32) -> (i32, i32) {
    %c0_i32 = arith.constant 0 : i32
    %c0_i32_0 = arith.constant 0 : i32
    return %arg0, %c0_i32 : i32, i32
  }
  func.func @transform_1(%arg0: i32) -> (i32, i32) {
    %c0_i32 = arith.constant 0 : i32
    %c0_i32_0 = arith.constant 0 : i32
    %c0_i32_1 = arith.constant 0 : i32
    return %c0_i32, %c0_i32_0 : i32, i32
  }
  func.func @transform_2(%arg0: i32) -> (i32, i32) {
    %c0_i32 = arith.constant 0 : i32
    %c0_i32_0 = arith.constant 0 : i32
    %c0_i32_1 = arith.constant 0 : i32
    return %c0_i32, %c0_i32_0 : i32, i32
  }
  func.func @transform_3(%arg0: i32) -> (i32, i32) {
    %c0_i32 = arith.constant 0 : i32
    %c0_i32_0 = arith.constant 0 : i32
    %c0_i32_1 = arith.constant 0 : i32
    return %c0_i32, %c0_i32_0 : i32, i32
  }
  func.func @transform_4(%arg0: i32) -> (i32, i32) {
    %c0_i32 = arith.constant 0 : i32
    %c0_i32_0 = arith.constant 0 : i32
    %c0_i32_1 = arith.constant 0 : i32
    return %c0_i32, %c0_i32_0 : i32, i32
  }
  func.func @transform_5(%arg0: i32) -> (i32, i32) {
    %c0_i32 = arith.constant 0 : i32
    %c0_i32_0 = arith.constant 0 : i32
    %c0_i32_1 = arith.constant 0 : i32
    return %c0_i32, %c0_i32_0 : i32, i32
  }
  func.func @transform_6(%arg0: i32) -> (i32, i32) {
    %c0_i32 = arith.constant 0 : i32
    %c0_i32_0 = arith.constant 0 : i32
    %c0_i32_1 = arith.constant 0 : i32
    return %c0_i32, %c0_i32_0 : i32, i32
  }
  func.func @transform_7(%arg0: i32) -> (i32, i32) {
    %c0_i32 = arith.constant 0 : i32
    %c0_i32_0 = arith.constant 0 : i32
    return %arg0, %c0_i32 : i32, i32
  }
  func.func @transform_8(%arg0: i32) -> (i32, i32) {
    %c0_i32 = arith.constant 0 : i32
    %c0_i32_0 = arith.constant 0 : i32
    return %arg0, %c0_i32 : i32, i32
  }
}

</mosaic_0001>

<llo_original>
// kernel: first_model_omniglot_forward.1
$region0: #{first_model_omniglot_forward.1}
  #allocation0 [shape = 'u32[]', space=smem, size = 0x4, offset = 0x4, fixed_abs, tag = 'smem constant byte address 0x4 - core index']
  #allocation1 [shape = 'u32[72,128]{1,0:T(1,128)}', space=vmem, size = 0x9000, scoped, tag = 'internal scratch']
  %s0 = inlined_call_operand.vmem [shape: bf16[8,3072], index: 0, kind: input, shape index: {}]
  %s1 = inlined_call_operand.vmem [shape: bf16[3072,64], index: 1, kind: input, shape index: {}]
  %s2 = inlined_call_operand.vmem [shape: f32[1,64], index: 2, kind: input, shape index: {}]
  %s3 = inlined_call_operand.vmem [shape: bf16[64,128], index: 3, kind: input, shape index: {}]
  %s4 = inlined_call_operand.vmem [shape: f32[1,128], index: 4, kind: input, shape index: {}]
  %s5 = inlined_call_operand.vmem [shape: bf16[128,128], index: 5, kind: input, shape index: {}]
  %s6 = inlined_call_operand.vmem [shape: f32[1,128], index: 6, kind: input, shape index: {}]
  %s7 = inlined_call_operand.vmem [shape: f32[8,128], index: 7, kind: output, shape index: {0}]
  %s8 = inlined_call_operand.vmem [shape: f32[8,128], index: 8, kind: output, shape index: {1}]
  %9 = xla_tuple %s7, %s8
  %s10 = sld [smem:[#allocation0]]
  $region46: #{first_model_omniglot_forward.1} parent=0
    _
  %s12 = ssub.s32 1, %s10
  %s13 = scalar_select 0, %s12, %s10
  // Predicated region
  $region2: #{first_model_omniglot_forward.1} parent=0 // pred_check
    _
  $region3: #{first_model_omniglot_forward.1} parent=0 // pred_check_branch
    %15 = sbr.rel (0) target = $region5
  $region4: #{first_model_omniglot_forward.1} parent=0 // pred_region
    _
  $region5: #{first_model_omniglot_forward.1} parent=0 // pred_fallthru
    _
  // Predicated region
  $region6: #{first_model_omniglot_forward.1} parent=0 // pred_check
    _
  $region7: #{first_model_omniglot_forward.1} parent=0 // pred_check_branch
    %17 = sbr.rel (0) target = $region9
  $region8: #{first_model_omniglot_forward.1} parent=0 // pred_region
    _
  $region9: #{first_model_omniglot_forward.1} parent=0 // pred_fallthru
    _
  // Predicated region
  $region10: #{first_model_omniglot_forward.1} parent=0 // pred_check
    _
  $region11: #{first_model_omniglot_forward.1} parent=0 // pred_check_branch
    %19 = sbr.rel (0) target = $region13
  $region12: #{first_model_omniglot_forward.1} parent=0 // pred_region
    _
  $region13: #{first_model_omniglot_forward.1} parent=0 // pred_fallthru
    _
  // Predicated region
  $region14: #{first_model_omniglot_forward.1} parent=0 // pred_check
    _
  $region15: #{first_model_omniglot_forward.1} parent=0 // pred_check_branch
    %21 = sbr.rel (0) target = $region17
  $region16: #{first_model_omniglot_forward.1} parent=0 // pred_region
    _
  $region17: #{first_model_omniglot_forward.1} parent=0 // pred_fallthru
    _
  // Predicated region
  $region18: #{first_model_omniglot_forward.1} parent=0 // pred_check
    _
  $region19: #{first_model_omniglot_forward.1} parent=0 // pred_check_branch
    %23 = sbr.rel (0) target = $region21
  $region20: #{first_model_omniglot_forward.1} parent=0 // pred_region
    _
  $region21: #{first_model_omniglot_forward.1} parent=0 // pred_fallthru
    _
  // Predicated region
  $region22: #{first_model_omniglot_forward.1} parent=0 // pred_check
    _
  $region23: #{first_model_omniglot_forward.1} parent=0 // pred_check_branch
    %25 = sbr.rel (0) target = $region25
  $region24: #{first_model_omniglot_forward.1} parent=0 // pred_region
    _
  $region25: #{first_model_omniglot_forward.1} parent=0 // pred_fallthru
    _
  // Predicated region
  $region26: #{first_model_omniglot_forward.1} parent=0 // pred_check
    _
  $region27: #{first_model_omniglot_forward.1} parent=0 // pred_check_branch
    %27 = sbr.rel (0) target = $region29
  $region28: #{first_model_omniglot_forward.1} parent=0 // pred_region
    _
  $region29: #{first_model_omniglot_forward.1} parent=0 // pred_fallthru
    _
  %v29 = vld [vmem:[%s0] sm:$0xff]
  %v30 = vld [vmem:[%s0 + $0x8] sm:$0xff]
  %v31 = vld [vmem:[%s0 + $0x10] sm:$0xff]
  %v32 = vld [vmem:[%s0 + $0x18] sm:$0xff]
  %v33 = vld [vmem:[%s0 + $0x20] sm:$0xff]
  %v34 = vld [vmem:[%s0 + $0x28] sm:$0xff]
  %v35 = vld [vmem:[%s0 + $0x30] sm:$0xff]
  %v36 = vld [vmem:[%s0 + $0x38] sm:$0xff]
  %v37 = vld [vmem:[%s0 + $0x40] sm:$0xff]
  %v38 = vld [vmem:[%s0 + $0x48] sm:$0xff]
  %v39 = vld [vmem:[%s0 + $0x50] sm:$0xff]
  %v40 = vld [vmem:[%s0 + $0x58] sm:$0xff]
  %v41 = vld [vmem:[%s1] sm:$0xf]
  %v42 = vld [vmem:[%s1 + $0x4] sm:$0xf]
  %v43 = vld [vmem:[%s1 + $0x8] sm:$0xf]
  %v44 = vld [vmem:[%s1 + $0xc] sm:$0xf]
  %v45 = vld [vmem:[%s1 + $0x10] sm:$0xf]
  %v46 = vld [vmem:[%s1 + $0x14] sm:$0xf]
  %v47 = vld [vmem:[%s1 + $0x18] sm:$0xf]
  %v48 = vld [vmem:[%s1 + $0x1c] sm:$0xf]
  %v49 = vld [vmem:[%s1 + $0x20] sm:$0xf]
  %v50 = vld [vmem:[%s1 + $0x24] sm:$0xf]
  %v51 = vld [vmem:[%s1 + $0x28] sm:$0xf]
  %v52 = vld [vmem:[%s1 + $0x2c] sm:$0xf]
  %v53 = vld [vmem:[%s1 + $0x30] sm:$0xf]
  %v54 = vld [vmem:[%s1 + $0x34] sm:$0xf]
  %v55 = vld [vmem:[%s1 + $0x38] sm:$0xf]
  %v56 = vld [vmem:[%s1 + $0x3c] sm:$0xf]
  %v57 = vld [vmem:[%s1 + $0x40] sm:$0xf]
  %v58 = vld [vmem:[%s1 + $0x44] sm:$0xf]
  %v59 = vld [vmem:[%s1 + $0x48] sm:$0xf]
  %v60 = vld [vmem:[%s1 + $0x4c] sm:$0xf]
  %v61 = vld [vmem:[%s1 + $0x50] sm:$0xf]
  %v62 = vld [vmem:[%s1 + $0x54] sm:$0xf]
  %v63 = vld [vmem:[%s1 + $0x58] sm:$0xf]
  %v64 = vld [vmem:[%s1 + $0x5c] sm:$0xf]
  %v65 = vld [vmem:[%s1 + $0x60] sm:$0xf]
  %v66 = vld [vmem:[%s1 + $0x64] sm:$0xf]
  %v67 = vld [vmem:[%s1 + $0x68] sm:$0xf]
  %v68 = vld [vmem:[%s1 + $0x6c] sm:$0xf]
  %v69 = vld [vmem:[%s1 + $0x70] sm:$0xf]
  %v70 = vld [vmem:[%s1 + $0x74] sm:$0xf]
  %v71 = vld [vmem:[%s1 + $0x78] sm:$0xf]
  %v72 = vld [vmem:[%s1 + $0x7c] sm:$0xf]
  %v73 = vld [vmem:[%s1 + $0x80] sm:$0xf]
  %v74 = vld [vmem:[%s1 + $0x84] sm:$0xf]
  %v75 = vld [vmem:[%s1 + $0x88] sm:$0xf]
  %v76 = vld [vmem:[%s1 + $0x8c] sm:$0xf]
  %v77 = vld [vmem:[%s1 + $0x90] sm:$0xf]
  %v78 = vld [vmem:[%s1 + $0x94] sm:$0xf]
  %v79 = vld [vmem:[%s1 + $0x98] sm:$0xf]
  %v80 = vld [vmem:[%s1 + $0x9c] sm:$0xf]
  %v81 = vld [vmem:[%s1 + $0xa0] sm:$0xf]
  %v82 = vld [vmem:[%s1 + $0xa4] sm:$0xf]
  %v83 = vld [vmem:[%s1 + $0xa8] sm:$0xf]
  %v84 = vld [vmem:[%s1 + $0xac] sm:$0xf]
  %v85 = vld [vmem:[%s1 + $0xb0] sm:$0xf]
  %v86 = vld [vmem:[%s1 + $0xb4] sm:$0xf]
  %v87 = vld [vmem:[%s1 + $0xb8] sm:$0xf]
  %v88 = vld [vmem:[%s1 + $0xbc] sm:$0xf]
  %v89 = vld [vmem:[%s1 + $0xc0] sm:$0xf]
  %v90 = vld [vmem:[%s1 + $0xc4] sm:$0xf]
  %v91 = vld [vmem:[%s1 + $0xc8] sm:$0xf]
  %v92 = vld [vmem:[%s1 + $0xcc] sm:$0xf]
  %v93 = vld [vmem:[%s1 + $0xd0] sm:$0xf]
  %v94 = vld [vmem:[%s1 + $0xd4] sm:$0xf]
  %v95 = vld [vmem:[%s1 + $0xd8] sm:$0xf]
  %v96 = vld [vmem:[%s1 + $0xdc] sm:$0xf]
  %v97 = vld [vmem:[%s1 + $0xe0] sm:$0xf]
  %v98 = vld [vmem:[%s1 + $0xe4] sm:$0xf]
  %v99 = vld [vmem:[%s1 + $0xe8] sm:$0xf]
  %v100 = vld [vmem:[%s1 + $0xec] sm:$0xf]
  %v101 = vld [vmem:[%s1 + $0xf0] sm:$0xf]
  %v102 = vld [vmem:[%s1 + $0xf4] sm:$0xf]
  %v103 = vld [vmem:[%s1 + $0xf8] sm:$0xf]
  %v104 = vld [vmem:[%s1 + $0xfc] sm:$0xf]
  %v105 = vld [vmem:[%s1 + $0x100] sm:$0xf]
  %v106 = vld [vmem:[%s1 + $0x104] sm:$0xf]
  %v107 = vld [vmem:[%s1 + $0x108] sm:$0xf]
  %v108 = vld [vmem:[%s1 + $0x10c] sm:$0xf]
  %v109 = vld [vmem:[%s1 + $0x110] sm:$0xf]
  %v110 = vld [vmem:[%s1 + $0x114] sm:$0xf]
  %v111 = vld [vmem:[%s1 + $0x118] sm:$0xf]
  %v112 = vld [vmem:[%s1 + $0x11c] sm:$0xf]
  %v113 = vld [vmem:[%s1 + $0x120] sm:$0xf]
  %v114 = vld [vmem:[%s1 + $0x124] sm:$0xf]
  %v115 = vld [vmem:[%s1 + $0x128] sm:$0xf]
  %v116 = vld [vmem:[%s1 + $0x12c] sm:$0xf]
  %v117 = vld [vmem:[%s1 + $0x130] sm:$0xf]
  %v118 = vld [vmem:[%s1 + $0x134] sm:$0xf]
  %v119 = vld [vmem:[%s1 + $0x138] sm:$0xf]
  %v120 = vld [vmem:[%s1 + $0x13c] sm:$0xf]
  %v121 = vld [vmem:[%s1 + $0x140] sm:$0xf]
  %v122 = vld [vmem:[%s1 + $0x144] sm:$0xf]
  %v123 = vld [vmem:[%s1 + $0x148] sm:$0xf]
  %v124 = vld [vmem:[%s1 + $0x14c] sm:$0xf]
  %v125 = vld [vmem:[%s1 + $0x150] sm:$0xf]
  %v126 = vld [vmem:[%s1 + $0x154] sm:$0xf]
  %v127 = vld [vmem:[%s1 + $0x158] sm:$0xf]
  %v128 = vld [vmem:[%s1 + $0x15c] sm:$0xf]
  %v129 = vld [vmem:[%s1 + $0x160] sm:$0xf]
  %v130 = vld [vmem:[%s1 + $0x164] sm:$0xf]
  %v131 = vld [vmem:[%s1 + $0x168] sm:$0xf]
  %v132 = vld [vmem:[%s1 + $0x16c] sm:$0xf]
  %v133 = vld [vmem:[%s1 + $0x170] sm:$0xf]
  %v134 = vld [vmem:[%s1 + $0x174] sm:$0xf]
  %v135 = vld [vmem:[%s1 + $0x178] sm:$0xf]
  %v136 = vld [vmem:[%s1 + $0x17c] sm:$0xf]
  %v137 = vld [vmem:[%s1 + $0x180] sm:$0xf]
  %v138 = vld [vmem:[%s1 + $0x184] sm:$0xf]
  %v139 = vld [vmem:[%s1 + $0x188] sm:$0xf]
  %v140 = vld [vmem:[%s1 + $0x18c] sm:$0xf]
  %v141 = vld [vmem:[%s1 + $0x190] sm:$0xf]
  %v142 = vld [vmem:[%s1 + $0x194] sm:$0xf]
  %v143 = vld [vmem:[%s1 + $0x198] sm:$0xf]
  %v144 = vld [vmem:[%s1 + $0x19c] sm:$0xf]
  %v145 = vld [vmem:[%s1 + $0x1a0] sm:$0xf]
  %v146 = vld [vmem:[%s1 + $0x1a4] sm:$0xf]
  %v147 = vld [vmem:[%s1 + $0x1a8] sm:$0xf]
  %v148 = vld [vmem:[%s1 + $0x1ac] sm:$0xf]
  %v149 = vld [vmem:[%s1 + $0x1b0] sm:$0xf]
  %v150 = vld [vmem:[%s1 + $0x1b4] sm:$0xf]
  %v151 = vld [vmem:[%s1 + $0x1b8] sm:$0xf]
  %v152 = vld [vmem:[%s1 + $0x1bc] sm:$0xf]
  %v153 = vld [vmem:[%s1 + $0x1c0] sm:$0xf]
  %v154 = vld [vmem:[%s1 + $0x1c4] sm:$0xf]
  %v155 = vld [vmem:[%s1 + $0x1c8] sm:$0xf]
  %v156 = vld [vmem:[%s1 + $0x1cc] sm:$0xf]
  %v157 = vld [vmem:[%s1 + $0x1d0] sm:$0xf]
  %v158 = vld [vmem:[%s1 + $0x1d4] sm:$0xf]
  %v159 = vld [vmem:[%s1 + $0x1d8] sm:$0xf]
  %v160 = vld [vmem:[%s1 + $0x1dc] sm:$0xf]
  %v161 = vld [vmem:[%s1 + $0x1e0] sm:$0xf]
  %v162 = vld [vmem:[%s1 + $0x1e4] sm:$0xf]
  %v163 = vld [vmem:[%s1 + $0x1e8] sm:$0xf]
  %v164 = vld [vmem:[%s1 + $0x1ec] sm:$0xf]
  %v165 = vld [vmem:[%s1 + $0x1f0] sm:$0xf]
  %v166 = vld [vmem:[%s1 + $0x1f4] sm:$0xf]
  %v167 = vld [vmem:[%s1 + $0x1f8] sm:$0xf]
  %v168 = vld [vmem:[%s1 + $0x1fc] sm:$0xf]
  %v169 = vld [vmem:[%s1 + $0x200] sm:$0xf]
  %v170 = vld [vmem:[%s1 + $0x204] sm:$0xf]
  %v171 = vld [vmem:[%s1 + $0x208] sm:$0xf]
  %v172 = vld [vmem:[%s1 + $0x20c] sm:$0xf]
  %v173 = vld [vmem:[%s1 + $0x210] sm:$0xf]
  %v174 = vld [vmem:[%s1 + $0x214] sm:$0xf]
  %v175 = vld [vmem:[%s1 + $0x218] sm:$0xf]
  %v176 = vld [vmem:[%s1 + $0x21c] sm:$0xf]
  %v177 = vld [vmem:[%s1 + $0x220] sm:$0xf]
  %v178 = vld [vmem:[%s1 + $0x224] sm:$0xf]
  %v179 = vld [vmem:[%s1 + $0x228] sm:$0xf]
  %v180 = vld [vmem:[%s1 + $0x22c] sm:$0xf]
  %v181 = vld [vmem:[%s1 + $0x230] sm:$0xf]
  %v182 = vld [vmem:[%s1 + $0x234] sm:$0xf]
  %v183 = vld [vmem:[%s1 + $0x238] sm:$0xf]
  %v184 = vld [vmem:[%s1 + $0x23c] sm:$0xf]
  %v185 = vld [vmem:[%s1 + $0x240] sm:$0xf]
  %v186 = vld [vmem:[%s1 + $0x244] sm:$0xf]
  %v187 = vld [vmem:[%s1 + $0x248] sm:$0xf]
  %v188 = vld [vmem:[%s1 + $0x24c] sm:$0xf]
  %v189 = vld [vmem:[%s1 + $0x250] sm:$0xf]
  %v190 = vld [vmem:[%s1 + $0x254] sm:$0xf]
  %v191 = vld [vmem:[%s1 + $0x258] sm:$0xf]
  %v192 = vld [vmem:[%s1 + $0x25c] sm:$0xf]
  %v193 = vld [vmem:[%s1 + $0x260] sm:$0xf]
  %v194 = vld [vmem:[%s1 + $0x264] sm:$0xf]
  %v195 = vld [vmem:[%s1 + $0x268] sm:$0xf]
  %v196 = vld [vmem:[%s1 + $0x26c] sm:$0xf]
  %v197 = vld [vmem:[%s1 + $0x270] sm:$0xf]
  %v198 = vld [vmem:[%s1 + $0x274] sm:$0xf]
  %v199 = vld [vmem:[%s1 + $0x278] sm:$0xf]
  %v200 = vld [vmem:[%s1 + $0x27c] sm:$0xf]
  %v201 = vld [vmem:[%s1 + $0x280] sm:$0xf]
  %v202 = vld [vmem:[%s1 + $0x284] sm:$0xf]
  %v203 = vld [vmem:[%s1 + $0x288] sm:$0xf]
  %v204 = vld [vmem:[%s1 + $0x28c] sm:$0xf]
  %v205 = vld [vmem:[%s1 + $0x290] sm:$0xf]
  %v206 = vld [vmem:[%s1 + $0x294] sm:$0xf]
  %v207 = vld [vmem:[%s1 + $0x298] sm:$0xf]
  %v208 = vld [vmem:[%s1 + $0x29c] sm:$0xf]
  %v209 = vld [vmem:[%s1 + $0x2a0] sm:$0xf]
  %v210 = vld [vmem:[%s1 + $0x2a4] sm:$0xf]
  %v211 = vld [vmem:[%s1 + $0x2a8] sm:$0xf]
  %v212 = vld [vmem:[%s1 + $0x2ac] sm:$0xf]
  %v213 = vld [vmem:[%s1 + $0x2b0] sm:$0xf]
  %v214 = vld [vmem:[%s1 + $0x2b4] sm:$0xf]
  %v215 = vld [vmem:[%s1 + $0x2b8] sm:$0xf]
  %v216 = vld [vmem:[%s1 + $0x2bc] sm:$0xf]
  %v217 = vld [vmem:[%s1 + $0x2c0] sm:$0xf]
  %v218 = vld [vmem:[%s1 + $0x2c4] sm:$0xf]
  %v219 = vld [vmem:[%s1 + $0x2c8] sm:$0xf]
  %v220 = vld [vmem:[%s1 + $0x2cc] sm:$0xf]
  %v221 = vld [vmem:[%s1 + $0x2d0] sm:$0xf]
  %v222 = vld [vmem:[%s1 + $0x2d4] sm:$0xf]
  %v223 = vld [vmem:[%s1 + $0x2d8] sm:$0xf]
  %v224 = vld [vmem:[%s1 + $0x2dc] sm:$0xf]
  %v225 = vld [vmem:[%s1 + $0x2e0] sm:$0xf]
  %v226 = vld [vmem:[%s1 + $0x2e4] sm:$0xf]
  %v227 = vld [vmem:[%s1 + $0x2e8] sm:$0xf]
  %v228 = vld [vmem:[%s1 + $0x2ec] sm:$0xf]
  %v229 = vld [vmem:[%s1 + $0x2f0] sm:$0xf]
  %v230 = vld [vmem:[%s1 + $0x2f4] sm:$0xf]
  %v231 = vld [vmem:[%s1 + $0x2f8] sm:$0xf]
  %v232 = vld [vmem:[%s1 + $0x2fc] sm:$0xf]
  %v233 = vld [vmem:[%s1 + $0x300] sm:$0xf]
  %v234 = vld [vmem:[%s1 + $0x304] sm:$0xf]
  %v235 = vld [vmem:[%s1 + $0x308] sm:$0xf]
  %v236 = vld [vmem:[%s1 + $0x30c] sm:$0xf]
  %v237 = vld [vmem:[%s1 + $0x310] sm:$0xf]
  %v238 = vld [vmem:[%s1 + $0x314] sm:$0xf]
  %v239 = vld [vmem:[%s1 + $0x318] sm:$0xf]
  %v240 = vld [vmem:[%s1 + $0x31c] sm:$0xf]
  %v241 = vld [vmem:[%s1 + $0x320] sm:$0xf]
  %v242 = vld [vmem:[%s1 + $0x324] sm:$0xf]
  %v243 = vld [vmem:[%s1 + $0x328] sm:$0xf]
  %v244 = vld [vmem:[%s1 + $0x32c] sm:$0xf]
  %v245 = vld [vmem:[%s1 + $0x330] sm:$0xf]
  %v246 = vld [vmem:[%s1 + $0x334] sm:$0xf]
  %v247 = vld [vmem:[%s1 + $0x338] sm:$0xf]
  %v248 = vld [vmem:[%s1 + $0x33c] sm:$0xf]
  %v249 = vld [vmem:[%s1 + $0x340] sm:$0xf]
  %v250 = vld [vmem:[%s1 + $0x344] sm:$0xf]
  %v251 = vld [vmem:[%s1 + $0x348] sm:$0xf]
  %v252 = vld [vmem:[%s1 + $0x34c] sm:$0xf]
  %v253 = vld [vmem:[%s1 + $0x350] sm:$0xf]
  %v254 = vld [vmem:[%s1 + $0x354] sm:$0xf]
  %v255 = vld [vmem:[%s1 + $0x358] sm:$0xf]
  %v256 = vld [vmem:[%s1 + $0x35c] sm:$0xf]
  %v257 = vld [vmem:[%s1 + $0x360] sm:$0xf]
  %v258 = vld [vmem:[%s1 + $0x364] sm:$0xf]
  %v259 = vld [vmem:[%s1 + $0x368] sm:$0xf]
  %v260 = vld [vmem:[%s1 + $0x36c] sm:$0xf]
  %v261 = vld [vmem:[%s1 + $0x370] sm:$0xf]
  %v262 = vld [vmem:[%s1 + $0x374] sm:$0xf]
  %v263 = vld [vmem:[%s1 + $0x378] sm:$0xf]
  %v264 = vld [vmem:[%s1 + $0x37c] sm:$0xf]
  %v265 = vld [vmem:[%s1 + $0x380] sm:$0xf]
  %v266 = vld [vmem:[%s1 + $0x384] sm:$0xf]
  %v267 = vld [vmem:[%s1 + $0x388] sm:$0xf]
  %v268 = vld [vmem:[%s1 + $0x38c] sm:$0xf]
  %v269 = vld [vmem:[%s1 + $0x390] sm:$0xf]
  %v270 = vld [vmem:[%s1 + $0x394] sm:$0xf]
  %v271 = vld [vmem:[%s1 + $0x398] sm:$0xf]
  %v272 = vld [vmem:[%s1 + $0x39c] sm:$0xf]
  %v273 = vld [vmem:[%s1 + $0x3a0] sm:$0xf]
  %v274 = vld [vmem:[%s1 + $0x3a4] sm:$0xf]
  %v275 = vld [vmem:[%s1 + $0x3a8] sm:$0xf]
  %v276 = vld [vmem:[%s1 + $0x3ac] sm:$0xf]
  %v277 = vld [vmem:[%s1 + $0x3b0] sm:$0xf]
  %v278 = vld [vmem:[%s1 + $0x3b4] sm:$0xf]
  %v279 = vld [vmem:[%s1 + $0x3b8] sm:$0xf]
  %v280 = vld [vmem:[%s1 + $0x3bc] sm:$0xf]
  %v281 = vld [vmem:[%s1 + $0x3c0] sm:$0xf]
  %v282 = vld [vmem:[%s1 + $0x3c4] sm:$0xf]
  %v283 = vld [vmem:[%s1 + $0x3c8] sm:$0xf]
  %v284 = vld [vmem:[%s1 + $0x3cc] sm:$0xf]
  %v285 = vld [vmem:[%s1 + $0x3d0] sm:$0xf]
  %v286 = vld [vmem:[%s1 + $0x3d4] sm:$0xf]
  %v287 = vld [vmem:[%s1 + $0x3d8] sm:$0xf]
  %v288 = vld [vmem:[%s1 + $0x3dc] sm:$0xf]
  %v289 = vld [vmem:[%s1 + $0x3e0] sm:$0xf]
  %v290 = vld [vmem:[%s1 + $0x3e4] sm:$0xf]
  %v291 = vld [vmem:[%s1 + $0x3e8] sm:$0xf]
  %v292 = vld [vmem:[%s1 + $0x3ec] sm:$0xf]
  %v293 = vld [vmem:[%s1 + $0x3f0] sm:$0xf]
  %v294 = vld [vmem:[%s1 + $0x3f4] sm:$0xf]
  %v295 = vld [vmem:[%s1 + $0x3f8] sm:$0xf]
  %v296 = vld [vmem:[%s1 + $0x3fc] sm:$0xf]
  %v297 = vld [vmem:[%s1 + $0x400] sm:$0xf]
  %v298 = vld [vmem:[%s1 + $0x404] sm:$0xf]
  %v299 = vld [vmem:[%s1 + $0x408] sm:$0xf]
  %v300 = vld [vmem:[%s1 + $0x40c] sm:$0xf]
  %v301 = vld [vmem:[%s1 + $0x410] sm:$0xf]
  %v302 = vld [vmem:[%s1 + $0x414] sm:$0xf]
  %v303 = vld [vmem:[%s1 + $0x418] sm:$0xf]
  %v304 = vld [vmem:[%s1 + $0x41c] sm:$0xf]
  %v305 = vld [vmem:[%s1 + $0x420] sm:$0xf]
  %v306 = vld [vmem:[%s1 + $0x424] sm:$0xf]
  %v307 = vld [vmem:[%s1 + $0x428] sm:$0xf]
  %v308 = vld [vmem:[%s1 + $0x42c] sm:$0xf]
  %v309 = vld [vmem:[%s1 + $0x430] sm:$0xf]
  %v310 = vld [vmem:[%s1 + $0x434] sm:$0xf]
  %v311 = vld [vmem:[%s1 + $0x438] sm:$0xf]
  %v312 = vld [vmem:[%s1 + $0x43c] sm:$0xf]
  %v313 = vld [vmem:[%s1 + $0x440] sm:$0xf]
  %v314 = vld [vmem:[%s1 + $0x444] sm:$0xf]
  %v315 = vld [vmem:[%s1 + $0x448] sm:$0xf]
  %v316 = vld [vmem:[%s1 + $0x44c] sm:$0xf]
  %v317 = vld [vmem:[%s1 + $0x450] sm:$0xf]
  %v318 = vld [vmem:[%s1 + $0x454] sm:$0xf]
  %v319 = vld [vmem:[%s1 + $0x458] sm:$0xf]
  %v320 = vld [vmem:[%s1 + $0x45c] sm:$0xf]
  %v321 = vld [vmem:[%s1 + $0x460] sm:$0xf]
  %v322 = vld [vmem:[%s1 + $0x464] sm:$0xf]
  %v323 = vld [vmem:[%s1 + $0x468] sm:$0xf]
  %v324 = vld [vmem:[%s1 + $0x46c] sm:$0xf]
  %v325 = vld [vmem:[%s1 + $0x470] sm:$0xf]
  %v326 = vld [vmem:[%s1 + $0x474] sm:$0xf]
  %v327 = vld [vmem:[%s1 + $0x478] sm:$0xf]
  %v328 = vld [vmem:[%s1 + $0x47c] sm:$0xf]
  %v329 = vld [vmem:[%s1 + $0x480] sm:$0xf]
  %v330 = vld [vmem:[%s1 + $0x484] sm:$0xf]
  %v331 = vld [vmem:[%s1 + $0x488] sm:$0xf]
  %v332 = vld [vmem:[%s1 + $0x48c] sm:$0xf]
  %v333 = vld [vmem:[%s1 + $0x490] sm:$0xf]
  %v334 = vld [vmem:[%s1 + $0x494] sm:$0xf]
  %v335 = vld [vmem:[%s1 + $0x498] sm:$0xf]
  %v336 = vld [vmem:[%s1 + $0x49c] sm:$0xf]
  %v337 = vld [vmem:[%s1 + $0x4a0] sm:$0xf]
  %v338 = vld [vmem:[%s1 + $0x4a4] sm:$0xf]
  %v339 = vld [vmem:[%s1 + $0x4a8] sm:$0xf]
  %v340 = vld [vmem:[%s1 + $0x4ac] sm:$0xf]
  %v341 = vld [vmem:[%s1 + $0x4b0] sm:$0xf]
  %v342 = vld [vmem:[%s1 + $0x4b4] sm:$0xf]
  %v343 = vld [vmem:[%s1 + $0x4b8] sm:$0xf]
  %v344 = vld [vmem:[%s1 + $0x4bc] sm:$0xf]
  %v345 = vld [vmem:[%s1 + $0x4c0] sm:$0xf]
  %v346 = vld [vmem:[%s1 + $0x4c4] sm:$0xf]
  %v347 = vld [vmem:[%s1 + $0x4c8] sm:$0xf]
  %v348 = vld [vmem:[%s1 + $0x4cc] sm:$0xf]
  %v349 = vld [vmem:[%s1 + $0x4d0] sm:$0xf]
  %v350 = vld [vmem:[%s1 + $0x4d4] sm:$0xf]
  %v351 = vld [vmem:[%s1 + $0x4d8] sm:$0xf]
  %v352 = vld [vmem:[%s1 + $0x4dc] sm:$0xf]
  %v353 = vld [vmem:[%s1 + $0x4e0] sm:$0xf]
  %v354 = vld [vmem:[%s1 + $0x4e4] sm:$0xf]
  %v355 = vld [vmem:[%s1 + $0x4e8] sm:$0xf]
  %v356 = vld [vmem:[%s1 + $0x4ec] sm:$0xf]
  %v357 = vld [vmem:[%s1 + $0x4f0] sm:$0xf]
  %v358 = vld [vmem:[%s1 + $0x4f4] sm:$0xf]
  %v359 = vld [vmem:[%s1 + $0x4f8] sm:$0xf]
  %v360 = vld [vmem:[%s1 + $0x4fc] sm:$0xf]
  %v361 = vld [vmem:[%s1 + $0x500] sm:$0xf]
  %v362 = vld [vmem:[%s1 + $0x504] sm:$0xf]
  %v363 = vld [vmem:[%s1 + $0x508] sm:$0xf]
  %v364 = vld [vmem:[%s1 + $0x50c] sm:$0xf]
  %v365 = vld [vmem:[%s1 + $0x510] sm:$0xf]
  %v366 = vld [vmem:[%s1 + $0x514] sm:$0xf]
  %v367 = vld [vmem:[%s1 + $0x518] sm:$0xf]
  %v368 = vld [vmem:[%s1 + $0x51c] sm:$0xf]
  %v369 = vld [vmem:[%s1 + $0x520] sm:$0xf]
  %v370 = vld [vmem:[%s1 + $0x524] sm:$0xf]
  %v371 = vld [vmem:[%s1 + $0x528] sm:$0xf]
  %v372 = vld [vmem:[%s1 + $0x52c] sm:$0xf]
  %v373 = vld [vmem:[%s1 + $0x530] sm:$0xf]
  %v374 = vld [vmem:[%s1 + $0x534] sm:$0xf]
  %v375 = vld [vmem:[%s1 + $0x538] sm:$0xf]
  %v376 = vld [vmem:[%s1 + $0x53c] sm:$0xf]
  %v377 = vld [vmem:[%s1 + $0x540] sm:$0xf]
  %v378 = vld [vmem:[%s1 + $0x544] sm:$0xf]
  %v379 = vld [vmem:[%s1 + $0x548] sm:$0xf]
  %v380 = vld [vmem:[%s1 + $0x54c] sm:$0xf]
  %v381 = vld [vmem:[%s1 + $0x550] sm:$0xf]
  %v382 = vld [vmem:[%s1 + $0x554] sm:$0xf]
  %v383 = vld [vmem:[%s1 + $0x558] sm:$0xf]
  %v384 = vld [vmem:[%s1 + $0x55c] sm:$0xf]
  %v385 = vld [vmem:[%s1 + $0x560] sm:$0xf]
  %v386 = vld [vmem:[%s1 + $0x564] sm:$0xf]
  %v387 = vld [vmem:[%s1 + $0x568] sm:$0xf]
  %v388 = vld [vmem:[%s1 + $0x56c] sm:$0xf]
  %v389 = vld [vmem:[%s1 + $0x570] sm:$0xf]
  %v390 = vld [vmem:[%s1 + $0x574] sm:$0xf]
  %v391 = vld [vmem:[%s1 + $0x578] sm:$0xf]
  %v392 = vld [vmem:[%s1 + $0x57c] sm:$0xf]
  %v393 = vld [vmem:[%s1 + $0x580] sm:$0xf]
  %v394 = vld [vmem:[%s1 + $0x584] sm:$0xf]
  %v395 = vld [vmem:[%s1 + $0x588] sm:$0xf]
  %v396 = vld [vmem:[%s1 + $0x58c] sm:$0xf]
  %v397 = vld [vmem:[%s1 + $0x590] sm:$0xf]
  %v398 = vld [vmem:[%s1 + $0x594] sm:$0xf]
  %v399 = vld [vmem:[%s1 + $0x598] sm:$0xf]
  %v400 = vld [vmem:[%s1 + $0x59c] sm:$0xf]
  %v401 = vld [vmem:[%s1 + $0x5a0] sm:$0xf]
  %v402 = vld [vmem:[%s1 + $0x5a4] sm:$0xf]
  %v403 = vld [vmem:[%s1 + $0x5a8] sm:$0xf]
  %v404 = vld [vmem:[%s1 + $0x5ac] sm:$0xf]
  %v405 = vld [vmem:[%s1 + $0x5b0] sm:$0xf]
  %v406 = vld [vmem:[%s1 + $0x5b4] sm:$0xf]
  %v407 = vld [vmem:[%s1 + $0x5b8] sm:$0xf]
  %v408 = vld [vmem:[%s1 + $0x5bc] sm:$0xf]
  %v409 = vld [vmem:[%s1 + $0x5c0] sm:$0xf]
  %v410 = vld [vmem:[%s1 + $0x5c4] sm:$0xf]
  %v411 = vld [vmem:[%s1 + $0x5c8] sm:$0xf]
  %v412 = vld [vmem:[%s1 + $0x5cc] sm:$0xf]
  %v413 = vld [vmem:[%s1 + $0x5d0] sm:$0xf]
  %v414 = vld [vmem:[%s1 + $0x5d4] sm:$0xf]
  %v415 = vld [vmem:[%s1 + $0x5d8] sm:$0xf]
  %v416 = vld [vmem:[%s1 + $0x5dc] sm:$0xf]
  %v417 = vld [vmem:[%s1 + $0x5e0] sm:$0xf]
  %v418 = vld [vmem:[%s1 + $0x5e4] sm:$0xf]
  %v419 = vld [vmem:[%s1 + $0x5e8] sm:$0xf]
  %v420 = vld [vmem:[%s1 + $0x5ec] sm:$0xf]
  %v421 = vld [vmem:[%s1 + $0x5f0] sm:$0xf]
  %v422 = vld [vmem:[%s1 + $0x5f4] sm:$0xf]
  %v423 = vld [vmem:[%s1 + $0x5f8] sm:$0xf]
  %v424 = vld [vmem:[%s1 + $0x5fc] sm:$0xf]
  %v425 = vld [vmem:[%s2] sm:$0x1]
  %v427 = vperm.slane %v425, 0
  %v441 = vunpack.c.l.b16 %v29
  %v442 = vunpack.c.h.b16 %v29
  %v443 = vunpack.c.l.b16 %v30
  %v444 = vunpack.c.h.b16 %v30
  %v445 = vunpack.c.l.b16 %v31
  %v446 = vunpack.c.h.b16 %v31
  %v447 = vunpack.c.l.b16 %v32
  %v448 = vunpack.c.h.b16 %v32
  %v449 = vunpack.c.l.b16 %v33
  %v450 = vunpack.c.h.b16 %v33
  %v451 = vunpack.c.l.b16 %v34
  %v452 = vunpack.c.h.b16 %v34
  %v453 = vunpack.c.l.b16 %v35
  %v454 = vunpack.c.h.b16 %v35
  %v455 = vunpack.c.l.b16 %v36
  %v456 = vunpack.c.h.b16 %v36
  %v457 = vunpack.c.l.b16 %v37
  %v458 = vunpack.c.h.b16 %v37
  %v459 = vunpack.c.l.b16 %v38
  %v460 = vunpack.c.h.b16 %v38
  %v461 = vunpack.c.l.b16 %v39
  %v462 = vunpack.c.h.b16 %v39
  %v463 = vunpack.c.l.b16 %v40
  %v464 = vunpack.c.h.b16 %v40
  %v465 = vpack.c.b16 %v441, %v441
  %v466 = vpack.c.b16 %v442, %v442
  %v467 = vpack.c.b16 %v443, %v443
  %v468 = vpack.c.b16 %v444, %v444
  %v469 = vpack.c.b16 %v445, %v445
  %v470 = vpack.c.b16 %v446, %v446
  %v471 = vpack.c.b16 %v447, %v447
  %v472 = vpack.c.b16 %v448, %v448
  %v473 = vpack.c.b16 %v449, %v449
  %v474 = vpack.c.b16 %v450, %v450
  %v475 = vpack.c.b16 %v451, %v451
  %v476 = vpack.c.b16 %v452, %v452
  %v477 = vpack.c.b16 %v453, %v453
  %v478 = vpack.c.b16 %v454, %v454
  %v479 = vpack.c.b16 %v455, %v455
  %v480 = vpack.c.b16 %v456, %v456
  %v481 = vpack.c.b16 %v457, %v457
  %v482 = vpack.c.b16 %v458, %v458
  %v483 = vpack.c.b16 %v459, %v459
  %v484 = vpack.c.b16 %v460, %v460
  %v485 = vpack.c.b16 %v461, %v461
  %v486 = vpack.c.b16 %v462, %v462
  %v487 = vpack.c.b16 %v463, %v463
  %v488 = vpack.c.b16 %v464, %v464
  %v897 = vunpack.c.l.b16 %v41
  %v898 = vunpack.c.l.b16 %v42
  %v899 = vunpack.c.l.b16 %v43
  %v900 = vunpack.c.l.b16 %v44
  %v901 = vunpack.c.l.b16 %v45
  %v902 = vunpack.c.l.b16 %v46
  %v903 = vunpack.c.l.b16 %v47
  %v904 = vunpack.c.l.b16 %v48
  %v905 = vunpack.c.l.b16 %v49
  %v906 = vunpack.c.l.b16 %v50
  %v907 = vunpack.c.l.b16 %v51
  %v908 = vunpack.c.l.b16 %v52
  %v909 = vunpack.c.l.b16 %v53
  %v910 = vunpack.c.l.b16 %v54
  %v911 = vunpack.c.l.b16 %v55
  %v912 = vunpack.c.l.b16 %v56
  %v913 = vunpack.c.l.b16 %v57
  %v914 = vunpack.c.l.b16 %v58
  %v915 = vunpack.c.l.b16 %v59
  %v916 = vunpack.c.l.b16 %v60
  %v917 = vunpack.c.l.b16 %v61
  %v918 = vunpack.c.l.b16 %v62
  %v919 = vunpack.c.l.b16 %v63
  %v920 = vunpack.c.l.b16 %v64
  %v921 = vunpack.c.l.b16 %v65
  %v922 = vunpack.c.l.b16 %v66
  %v923 = vunpack.c.l.b16 %v67
  %v924 = vunpack.c.l.b16 %v68
  %v925 = vunpack.c.l.b16 %v69
  %v926 = vunpack.c.l.b16 %v70
  %v927 = vunpack.c.l.b16 %v71
  %v928 = vunpack.c.l.b16 %v72
  %v929 = vunpack.c.l.b16 %v73
  %v930 = vunpack.c.l.b16 %v74
  %v931 = vunpack.c.l.b16 %v75
  %v932 = vunpack.c.l.b16 %v76
  %v933 = vunpack.c.l.b16 %v77
  %v934 = vunpack.c.l.b16 %v78
  %v935 = vunpack.c.l.b16 %v79
  %v936 = vunpack.c.l.b16 %v80
  %v937 = vunpack.c.l.b16 %v81
  %v938 = vunpack.c.l.b16 %v82
  %v939 = vunpack.c.l.b16 %v83
  %v940 = vunpack.c.l.b16 %v84
  %v941 = vunpack.c.l.b16 %v85
  %v942 = vunpack.c.l.b16 %v86
  %v943 = vunpack.c.l.b16 %v87
  %v944 = vunpack.c.l.b16 %v88
  %v945 = vunpack.c.l.b16 %v89
  %v946 = vunpack.c.l.b16 %v90
  %v947 = vunpack.c.l.b16 %v91
  %v948 = vunpack.c.l.b16 %v92
  %v949 = vunpack.c.l.b16 %v93
  %v950 = vunpack.c.l.b16 %v94
  %v951 = vunpack.c.l.b16 %v95
  %v952 = vunpack.c.l.b16 %v96
  %v953 = vunpack.c.l.b16 %v97
  %v954 = vunpack.c.l.b16 %v98
  %v955 = vunpack.c.l.b16 %v99
  %v956 = vunpack.c.l.b16 %v100
  %v957 = vunpack.c.l.b16 %v101
  %v958 = vunpack.c.l.b16 %v102
  %v959 = vunpack.c.l.b16 %v103
  %v960 = vunpack.c.l.b16 %v104
  %v961 = vunpack.c.l.b16 %v105
  %v962 = vunpack.c.l.b16 %v106
  %v963 = vunpack.c.l.b16 %v107
  %v964 = vunpack.c.l.b16 %v108
  %v965 = vunpack.c.l.b16 %v109
  %v966 = vunpack.c.l.b16 %v110
  %v967 = vunpack.c.l.b16 %v111
  %v968 = vunpack.c.l.b16 %v112
  %v969 = vunpack.c.l.b16 %v113
  %v970 = vunpack.c.l.b16 %v114
  %v971 = vunpack.c.l.b16 %v115
  %v972 = vunpack.c.l.b16 %v116
  %v973 = vunpack.c.l.b16 %v117
  %v974 = vunpack.c.l.b16 %v118
  %v975 = vunpack.c.l.b16 %v119
  %v976 = vunpack.c.l.b16 %v120
  %v977 = vunpack.c.l.b16 %v121
  %v978 = vunpack.c.l.b16 %v122
  %v979 = vunpack.c.l.b16 %v123
  %v980 = vunpack.c.l.b16 %v124
  %v981 = vunpack.c.l.b16 %v125
  %v982 = vunpack.c.l.b16 %v126
  %v983 = vunpack.c.l.b16 %v127
  %v984 = vunpack.c.l.b16 %v128
  %v985 = vunpack.c.l.b16 %v129
  %v986 = vunpack.c.l.b16 %v130
  %v987 = vunpack.c.l.b16 %v131
  %v988 = vunpack.c.l.b16 %v132
  %v989 = vunpack.c.l.b16 %v133
  %v990 = vunpack.c.l.b16 %v134
  %v991 = vunpack.c.l.b16 %v135
  %v992 = vunpack.c.l.b16 %v136
  %v993 = vunpack.c.l.b16 %v137
  %v994 = vunpack.c.l.b16 %v138
  %v995 = vunpack.c.l.b16 %v139
  %v996 = vunpack.c.l.b16 %v140
  %v997 = vunpack.c.l.b16 %v141
  %v998 = vunpack.c.l.b16 %v142
  %v999 = vunpack.c.l.b16 %v143
  %v1000 = vunpack.c.l.b16 %v144
  %v1001 = vunpack.c.l.b16 %v145
  %v1002 = vunpack.c.l.b16 %v146
  %v1003 = vunpack.c.l.b16 %v147
  %v1004 = vunpack.c.l.b16 %v148
  %v1005 = vunpack.c.l.b16 %v149
  %v1006 = vunpack.c.l.b16 %v150
  %v1007 = vunpack.c.l.b16 %v151
  %v1008 = vunpack.c.l.b16 %v152
  %v1009 = vunpack.c.l.b16 %v153
  %v1010 = vunpack.c.l.b16 %v154
  %v1011 = vunpack.c.l.b16 %v155
  %v1012 = vunpack.c.l.b16 %v156
  %v1013 = vunpack.c.l.b16 %v157
  %v1014 = vunpack.c.l.b16 %v158
  %v1015 = vunpack.c.l.b16 %v159
  %v1016 = vunpack.c.l.b16 %v160
  %v1017 = vunpack.c.l.b16 %v161
  %v1018 = vunpack.c.l.b16 %v162
  %v1019 = vunpack.c.l.b16 %v163
  %v1020 = vunpack.c.l.b16 %v164
  %v1021 = vunpack.c.l.b16 %v165
  %v1022 = vunpack.c.l.b16 %v166
  %v1023 = vunpack.c.l.b16 %v167
  %v1024 = vunpack.c.l.b16 %v168
  %v1025 = vunpack.c.l.b16 %v169
  %v1026 = vunpack.c.l.b16 %v170
  %v1027 = vunpack.c.l.b16 %v171
  %v1028 = vunpack.c.l.b16 %v172
  %v1029 = vunpack.c.l.b16 %v173
  %v1030 = vunpack.c.l.b16 %v174
  %v1031 = vunpack.c.l.b16 %v175
  %v1032 = vunpack.c.l.b16 %v176
  %v1033 = vunpack.c.l.b16 %v177
  %v1034 = vunpack.c.l.b16 %v178
  %v1035 = vunpack.c.l.b16 %v179
  %v1036 = vunpack.c.l.b16 %v180
  %v1037 = vunpack.c.l.b16 %v181
  %v1038 = vunpack.c.l.b16 %v182
  %v1039 = vunpack.c.l.b16 %v183
  %v1040 = vunpack.c.l.b16 %v184
  %v1041 = vunpack.c.l.b16 %v185
  %v1042 = vunpack.c.l.b16 %v186
  %v1043 = vunpack.c.l.b16 %v187
  %v1044 = vunpack.c.l.b16 %v188
  %v1045 = vunpack.c.l.b16 %v189
  %v1046 = vunpack.c.l.b16 %v190
  %v1047 = vunpack.c.l.b16 %v191
  %v1048 = vunpack.c.l.b16 %v192
  %v1049 = vunpack.c.l.b16 %v193
  %v1050 = vunpack.c.l.b16 %v194
  %v1051 = vunpack.c.l.b16 %v195
  %v1052 = vunpack.c.l.b16 %v196
  %v1053 = vunpack.c.l.b16 %v197
  %v1054 = vunpack.c.l.b16 %v198
  %v1055 = vunpack.c.l.b16 %v199
  %v1056 = vunpack.c.l.b16 %v200
  %v1057 = vunpack.c.l.b16 %v201
  %v1058 = vunpack.c.l.b16 %v202
  %v1059 = vunpack.c.l.b16 %v203
  %v1060 = vunpack.c.l.b16 %v204
  %v1061 = vunpack.c.l.b16 %v205
  %v1062 = vunpack.c.l.b16 %v206
  %v1063 = vunpack.c.l.b16 %v207
  %v1064 = vunpack.c.l.b16 %v208
  %v1065 = vunpack.c.l.b16 %v209
  %v1066 = vunpack.c.l.b16 %v210
  %v1067 = vunpack.c.l.b16 %v211
  %v1068 = vunpack.c.l.b16 %v212
  %v1069 = vunpack.c.l.b16 %v213
  %v1070 = vunpack.c.l.b16 %v214
  %v1071 = vunpack.c.l.b16 %v215
  %v1072 = vunpack.c.l.b16 %v216
  %v1073 = vunpack.c.l.b16 %v217
  %v1074 = vunpack.c.l.b16 %v218
  %v1075 = vunpack.c.l.b16 %v219
  %v1076 = vunpack.c.l.b16 %v220
  %v1077 = vunpack.c.l.b16 %v221
  %v1078 = vunpack.c.l.b16 %v222
  %v1079 = vunpack.c.l.b16 %v223
  %v1080 = vunpack.c.l.b16 %v224
  %v1081 = vunpack.c.l.b16 %v225
  %v1082 = vunpack.c.l.b16 %v226
  %v1083 = vunpack.c.l.b16 %v227
  %v1084 = vunpack.c.l.b16 %v228
  %v1085 = vunpack.c.l.b16 %v229
  %v1086 = vunpack.c.l.b16 %v230
  %v1087 = vunpack.c.l.b16 %v231
  %v1088 = vunpack.c.l.b16 %v232
  %v1089 = vunpack.c.l.b16 %v233
  %v1090 = vunpack.c.l.b16 %v234
  %v1091 = vunpack.c.l.b16 %v235
  %v1092 = vunpack.c.l.b16 %v236
  %v1093 = vunpack.c.l.b16 %v237
  %v1094 = vunpack.c.l.b16 %v238
  %v1095 = vunpack.c.l.b16 %v239
  %v1096 = vunpack.c.l.b16 %v240
  %v1097 = vunpack.c.l.b16 %v241
  %v1098 = vunpack.c.l.b16 %v242
  %v1099 = vunpack.c.l.b16 %v243
  %v1100 = vunpack.c.l.b16 %v244
  %v1101 = vunpack.c.l.b16 %v245
  %v1102 = vunpack.c.l.b16 %v246
  %v1103 = vunpack.c.l.b16 %v247
  %v1104 = vunpack.c.l.b16 %v248
  %v1105 = vunpack.c.l.b16 %v249
  %v1106 = vunpack.c.l.b16 %v250
  %v1107 = vunpack.c.l.b16 %v251
  %v1108 = vunpack.c.l.b16 %v252
  %v1109 = vunpack.c.l.b16 %v253
  %v1110 = vunpack.c.l.b16 %v254
  %v1111 = vunpack.c.l.b16 %v255
  %v1112 = vunpack.c.l.b16 %v256
  %v1113 = vunpack.c.l.b16 %v257
  %v1114 = vunpack.c.l.b16 %v258
  %v1115 = vunpack.c.l.b16 %v259
  %v1116 = vunpack.c.l.b16 %v260
  %v1117 = vunpack.c.l.b16 %v261
  %v1118 = vunpack.c.l.b16 %v262
  %v1119 = vunpack.c.l.b16 %v263
  %v1120 = vunpack.c.l.b16 %v264
  %v1121 = vunpack.c.l.b16 %v265
  %v1122 = vunpack.c.l.b16 %v266
  %v1123 = vunpack.c.l.b16 %v267
  %v1124 = vunpack.c.l.b16 %v268
  %v1125 = vunpack.c.l.b16 %v269
  %v1126 = vunpack.c.l.b16 %v270
  %v1127 = vunpack.c.l.b16 %v271
  %v1128 = vunpack.c.l.b16 %v272
  %v1129 = vunpack.c.l.b16 %v273
  %v1130 = vunpack.c.l.b16 %v274
  %v1131 = vunpack.c.l.b16 %v275
  %v1132 = vunpack.c.l.b16 %v276
  %v1133 = vunpack.c.l.b16 %v277
  %v1134 = vunpack.c.l.b16 %v278
  %v1135 = vunpack.c.l.b16 %v279
  %v1136 = vunpack.c.l.b16 %v280
  %v1137 = vunpack.c.l.b16 %v281
  %v1138 = vunpack.c.l.b16 %v282
  %v1139 = vunpack.c.l.b16 %v283
  %v1140 = vunpack.c.l.b16 %v284
  %v1141 = vunpack.c.l.b16 %v285
  %v1142 = vunpack.c.l.b16 %v286
  %v1143 = vunpack.c.l.b16 %v287
  %v1144 = vunpack.c.l.b16 %v288
  %v1145 = vunpack.c.l.b16 %v289
  %v1146 = vunpack.c.l.b16 %v290
  %v1147 = vunpack.c.l.b16 %v291
  %v1148 = vunpack.c.l.b16 %v292
  %v1149 = vunpack.c.l.b16 %v293
  %v1150 = vunpack.c.l.b16 %v294
  %v1151 = vunpack.c.l.b16 %v295
  %v1152 = vunpack.c.l.b16 %v296
  %v1153 = vunpack.c.l.b16 %v297
  %v1154 = vunpack.c.l.b16 %v298
  %v1155 = vunpack.c.l.b16 %v299
  %v1156 = vunpack.c.l.b16 %v300
  %v1157 = vunpack.c.l.b16 %v301
  %v1158 = vunpack.c.l.b16 %v302
  %v1159 = vunpack.c.l.b16 %v303
  %v1160 = vunpack.c.l.b16 %v304
  %v1161 = vunpack.c.l.b16 %v305
  %v1162 = vunpack.c.l.b16 %v306
  %v1163 = vunpack.c.l.b16 %v307
  %v1164 = vunpack.c.l.b16 %v308
  %v1165 = vunpack.c.l.b16 %v309
  %v1166 = vunpack.c.l.b16 %v310
  %v1167 = vunpack.c.l.b16 %v311
  %v1168 = vunpack.c.l.b16 %v312
  %v1169 = vunpack.c.l.b16 %v313
  %v1170 = vunpack.c.l.b16 %v314
  %v1171 = vunpack.c.l.b16 %v315
  %v1172 = vunpack.c.l.b16 %v316
  %v1173 = vunpack.c.l.b16 %v317
  %v1174 = vunpack.c.l.b16 %v318
  %v1175 = vunpack.c.l.b16 %v319
  %v1176 = vunpack.c.l.b16 %v320
  %v1177 = vunpack.c.l.b16 %v321
  %v1178 = vunpack.c.l.b16 %v322
  %v1179 = vunpack.c.l.b16 %v323
  %v1180 = vunpack.c.l.b16 %v324
  %v1181 = vunpack.c.l.b16 %v325
  %v1182 = vunpack.c.l.b16 %v326
  %v1183 = vunpack.c.l.b16 %v327
  %v1184 = vunpack.c.l.b16 %v328
  %v1185 = vunpack.c.l.b16 %v329
  %v1186 = vunpack.c.l.b16 %v330
  %v1187 = vunpack.c.l.b16 %v331
  %v1188 = vunpack.c.l.b16 %v332
  %v1189 = vunpack.c.l.b16 %v333
  %v1190 = vunpack.c.l.b16 %v334
  %v1191 = vunpack.c.l.b16 %v335
  %v1192 = vunpack.c.l.b16 %v336
  %v1193 = vunpack.c.l.b16 %v337
  %v1194 = vunpack.c.l.b16 %v338
  %v1195 = vunpack.c.l.b16 %v339
  %v1196 = vunpack.c.l.b16 %v340
  %v1197 = vunpack.c.l.b16 %v341
  %v1198 = vunpack.c.l.b16 %v342
  %v1199 = vunpack.c.l.b16 %v343
  %v1200 = vunpack.c.l.b16 %v344
  %v1201 = vunpack.c.l.b16 %v345
  %v1202 = vunpack.c.l.b16 %v346
  %v1203 = vunpack.c.l.b16 %v347
  %v1204 = vunpack.c.l.b16 %v348
  %v1205 = vunpack.c.l.b16 %v349
  %v1206 = vunpack.c.l.b16 %v350
  %v1207 = vunpack.c.l.b16 %v351
  %v1208 = vunpack.c.l.b16 %v352
  %v1209 = vunpack.c.l.b16 %v353
  %v1210 = vunpack.c.l.b16 %v354
  %v1211 = vunpack.c.l.b16 %v355
  %v1212 = vunpack.c.l.b16 %v356
  %v1213 = vunpack.c.l.b16 %v357
  %v1214 = vunpack.c.l.b16 %v358
  %v1215 = vunpack.c.l.b16 %v359
  %v1216 = vunpack.c.l.b16 %v360
  %v1217 = vunpack.c.l.b16 %v361
  %v1218 = vunpack.c.l.b16 %v362
  %v1219 = vunpack.c.l.b16 %v363
  %v1220 = vunpack.c.l.b16 %v364
  %v1221 = vunpack.c.l.b16 %v365
  %v1222 = vunpack.c.l.b16 %v366
  %v1223 = vunpack.c.l.b16 %v367
  %v1224 = vunpack.c.l.b16 %v368
  %v1225 = vunpack.c.l.b16 %v369
  %v1226 = vunpack.c.l.b16 %v370
  %v1227 = vunpack.c.l.b16 %v371
  %v1228 = vunpack.c.l.b16 %v372
  %v1229 = vunpack.c.l.b16 %v373
  %v1230 = vunpack.c.l.b16 %v374
  %v1231 = vunpack.c.l.b16 %v375
  %v1232 = vunpack.c.l.b16 %v376
  %v1233 = vunpack.c.l.b16 %v377
  %v1234 = vunpack.c.l.b16 %v378
  %v1235 = vunpack.c.l.b16 %v379
  %v1236 = vunpack.c.l.b16 %v380
  %v1237 = vunpack.c.l.b16 %v381
  %v1238 = vunpack.c.l.b16 %v382
  %v1239 = vunpack.c.l.b16 %v383
  %v1240 = vunpack.c.l.b16 %v384
  %v1241 = vunpack.c.l.b16 %v385
  %v1242 = vunpack.c.l.b16 %v386
  %v1243 = vunpack.c.l.b16 %v387
  %v1244 = vunpack.c.l.b16 %v388
  %v1245 = vunpack.c.l.b16 %v389
  %v1246 = vunpack.c.l.b16 %v390
  %v1247 = vunpack.c.l.b16 %v391
  %v1248 = vunpack.c.l.b16 %v392
  %v1249 = vunpack.c.l.b16 %v393
  %v1250 = vunpack.c.l.b16 %v394
  %v1251 = vunpack.c.l.b16 %v395
  %v1252 = vunpack.c.l.b16 %v396
  %v1253 = vunpack.c.l.b16 %v397
  %v1254 = vunpack.c.l.b16 %v398
  %v1255 = vunpack.c.l.b16 %v399
  %v1256 = vunpack.c.l.b16 %v400
  %v1257 = vunpack.c.l.b16 %v401
  %v1258 = vunpack.c.l.b16 %v402
  %v1259 = vunpack.c.l.b16 %v403
  %v1260 = vunpack.c.l.b16 %v404
  %v1261 = vunpack.c.l.b16 %v405
  %v1262 = vunpack.c.l.b16 %v406
  %v1263 = vunpack.c.l.b16 %v407
  %v1264 = vunpack.c.l.b16 %v408
  %v1265 = vunpack.c.l.b16 %v409
  %v1266 = vunpack.c.l.b16 %v410
  %v1267 = vunpack.c.l.b16 %v411
  %v1268 = vunpack.c.l.b16 %v412
  %v1269 = vunpack.c.l.b16 %v413
  %v1270 = vunpack.c.l.b16 %v414
  %v1271 = vunpack.c.l.b16 %v415
  %v1272 = vunpack.c.l.b16 %v416
  %v1273 = vunpack.c.l.b16 %v417
  %v1274 = vunpack.c.l.b16 %v418
  %v1275 = vunpack.c.l.b16 %v419
  %v1276 = vunpack.c.l.b16 %v420
  %v1277 = vunpack.c.l.b16 %v421
  %v1278 = vunpack.c.l.b16 %v422
  %v1279 = vunpack.c.l.b16 %v423
  %v1280 = vunpack.c.l.b16 %v424
  %v1281 = vpack.c.b16 %v898, %v897
  %v1282 = vpack.c.b16 %v900, %v899
  %v1283 = vpack.c.b16 %v902, %v901
  %v1284 = vpack.c.b16 %v904, %v903
  %v1285 = vpack.c.b16 %v906, %v905
  %v1286 = vpack.c.b16 %v908, %v907
  %v1287 = vpack.c.b16 %v910, %v909
  %v1288 = vpack.c.b16 %v912, %v911
  %v1289 = vpack.c.b16 %v914, %v913
  %v1290 = vpack.c.b16 %v916, %v915
  %v1291 = vpack.c.b16 %v918, %v917
  %v1292 = vpack.c.b16 %v920, %v919
  %v1293 = vpack.c.b16 %v922, %v921
  %v1294 = vpack.c.b16 %v924, %v923
  %v1295 = vpack.c.b16 %v926, %v925
  %v1296 = vpack.c.b16 %v928, %v927
  %v1297 = vpack.c.b16 %v930, %v929
  %v1298 = vpack.c.b16 %v932, %v931
  %v1299 = vpack.c.b16 %v934, %v933
  %v1300 = vpack.c.b16 %v936, %v935
  %v1301 = vpack.c.b16 %v938, %v937
  %v1302 = vpack.c.b16 %v940, %v939
  %v1303 = vpack.c.b16 %v942, %v941
  %v1304 = vpack.c.b16 %v944, %v943
  %v1305 = vpack.c.b16 %v946, %v945
  %v1306 = vpack.c.b16 %v948, %v947
  %v1307 = vpack.c.b16 %v950, %v949
  %v1308 = vpack.c.b16 %v952, %v951
  %v1309 = vpack.c.b16 %v954, %v953
  %v1310 = vpack.c.b16 %v956, %v955
  %v1311 = vpack.c.b16 %v958, %v957
  %v1312 = vpack.c.b16 %v960, %v959
  %v1313 = vpack.c.b16 %v962, %v961
  %v1314 = vpack.c.b16 %v964, %v963
  %v1315 = vpack.c.b16 %v966, %v965
  %v1316 = vpack.c.b16 %v968, %v967
  %v1317 = vpack.c.b16 %v970, %v969
  %v1318 = vpack.c.b16 %v972, %v971
  %v1319 = vpack.c.b16 %v974, %v973
  %v1320 = vpack.c.b16 %v976, %v975
  %v1321 = vpack.c.b16 %v978, %v977
  %v1322 = vpack.c.b16 %v980, %v979
  %v1323 = vpack.c.b16 %v982, %v981
  %v1324 = vpack.c.b16 %v984, %v983
  %v1325 = vpack.c.b16 %v986, %v985
  %v1326 = vpack.c.b16 %v988, %v987
  %v1327 = vpack.c.b16 %v990, %v989
  %v1328 = vpack.c.b16 %v992, %v991
  %v1329 = vpack.c.b16 %v994, %v993
  %v1330 = vpack.c.b16 %v996, %v995
  %v1331 = vpack.c.b16 %v998, %v997
  %v1332 = vpack.c.b16 %v1000, %v999
  %v1333 = vpack.c.b16 %v1002, %v1001
  %v1334 = vpack.c.b16 %v1004, %v1003
  %v1335 = vpack.c.b16 %v1006, %v1005
  %v1336 = vpack.c.b16 %v1008, %v1007
  %v1337 = vpack.c.b16 %v1010, %v1009
  %v1338 = vpack.c.b16 %v1012, %v1011
  %v1339 = vpack.c.b16 %v1014, %v1013
  %v1340 = vpack.c.b16 %v1016, %v1015
  %v1341 = vpack.c.b16 %v1018, %v1017
  %v1342 = vpack.c.b16 %v1020, %v1019
  %v1343 = vpack.c.b16 %v1022, %v1021
  %v1344 = vpack.c.b16 %v1024, %v1023
  %v1345 = vpack.c.b16 %v1026, %v1025
  %v1346 = vpack.c.b16 %v1028, %v1027
  %v1347 = vpack.c.b16 %v1030, %v1029
  %v1348 = vpack.c.b16 %v1032, %v1031
  %v1349 = vpack.c.b16 %v1034, %v1033
  %v1350 = vpack.c.b16 %v1036, %v1035
  %v1351 = vpack.c.b16 %v1038, %v1037
  %v1352 = vpack.c.b16 %v1040, %v1039
  %v1353 = vpack.c.b16 %v1042, %v1041
  %v1354 = vpack.c.b16 %v1044, %v1043
  %v1355 = vpack.c.b16 %v1046, %v1045
  %v1356 = vpack.c.b16 %v1048, %v1047
  %v1357 = vpack.c.b16 %v1050, %v1049
  %v1358 = vpack.c.b16 %v1052, %v1051
  %v1359 = vpack.c.b16 %v1054, %v1053
  %v1360 = vpack.c.b16 %v1056, %v1055
  %v1361 = vpack.c.b16 %v1058, %v1057
  %v1362 = vpack.c.b16 %v1060, %v1059
  %v1363 = vpack.c.b16 %v1062, %v1061
  %v1364 = vpack.c.b16 %v1064, %v1063
  %v1365 = vpack.c.b16 %v1066, %v1065
  %v1366 = vpack.c.b16 %v1068, %v1067
  %v1367 = vpack.c.b16 %v1070, %v1069
  %v1368 = vpack.c.b16 %v1072, %v1071
  %v1369 = vpack.c.b16 %v1074, %v1073
  %v1370 = vpack.c.b16 %v1076, %v1075
  %v1371 = vpack.c.b16 %v1078, %v1077
  %v1372 = vpack.c.b16 %v1080, %v1079
  %v1373 = vpack.c.b16 %v1082, %v1081
  %v1374 = vpack.c.b16 %v1084, %v1083
  %v1375 = vpack.c.b16 %v1086, %v1085
  %v1376 = vpack.c.b16 %v1088, %v1087
  %v1377 = vpack.c.b16 %v1090, %v1089
  %v1378 = vpack.c.b16 %v1092, %v1091
  %v1379 = vpack.c.b16 %v1094, %v1093
  %v1380 = vpack.c.b16 %v1096, %v1095
  %v1381 = vpack.c.b16 %v1098, %v1097
  %v1382 = vpack.c.b16 %v1100, %v1099
  %v1383 = vpack.c.b16 %v1102, %v1101
  %v1384 = vpack.c.b16 %v1104, %v1103
  %v1385 = vpack.c.b16 %v1106, %v1105
  %v1386 = vpack.c.b16 %v1108, %v1107
  %v1387 = vpack.c.b16 %v1110, %v1109
  %v1388 = vpack.c.b16 %v1112, %v1111
  %v1389 = vpack.c.b16 %v1114, %v1113
  %v1390 = vpack.c.b16 %v1116, %v1115
  %v1391 = vpack.c.b16 %v1118, %v1117
  %v1392 = vpack.c.b16 %v1120, %v1119
  %v1393 = vpack.c.b16 %v1122, %v1121
  %v1394 = vpack.c.b16 %v1124, %v1123
  %v1395 = vpack.c.b16 %v1126, %v1125
  %v1396 = vpack.c.b16 %v1128, %v1127
  %v1397 = vpack.c.b16 %v1130, %v1129
  %v1398 = vpack.c.b16 %v1132, %v1131
  %v1399 = vpack.c.b16 %v1134, %v1133
  %v1400 = vpack.c.b16 %v1136, %v1135
  %v1401 = vpack.c.b16 %v1138, %v1137
  %v1402 = vpack.c.b16 %v1140, %v1139
  %v1403 = vpack.c.b16 %v1142, %v1141
  %v1404 = vpack.c.b16 %v1144, %v1143
  %v1405 = vpack.c.b16 %v1146, %v1145
  %v1406 = vpack.c.b16 %v1148, %v1147
  %v1407 = vpack.c.b16 %v1150, %v1149
  %v1408 = vpack.c.b16 %v1152, %v1151
  %v1409 = vpack.c.b16 %v1154, %v1153
  %v1410 = vpack.c.b16 %v1156, %v1155
  %v1411 = vpack.c.b16 %v1158, %v1157
  %v1412 = vpack.c.b16 %v1160, %v1159
  %v1413 = vpack.c.b16 %v1162, %v1161
  %v1414 = vpack.c.b16 %v1164, %v1163
  %v1415 = vpack.c.b16 %v1166, %v1165
  %v1416 = vpack.c.b16 %v1168, %v1167
  %v1417 = vpack.c.b16 %v1170, %v1169
  %v1418 = vpack.c.b16 %v1172, %v1171
  %v1419 = vpack.c.b16 %v1174, %v1173
  %v1420 = vpack.c.b16 %v1176, %v1175
  %v1421 = vpack.c.b16 %v1178, %v1177
  %v1422 = vpack.c.b16 %v1180, %v1179
  %v1423 = vpack.c.b16 %v1182, %v1181
  %v1424 = vpack.c.b16 %v1184, %v1183
  %v1425 = vpack.c.b16 %v1186, %v1185
  %v1426 = vpack.c.b16 %v1188, %v1187
  %v1427 = vpack.c.b16 %v1190, %v1189
  %v1428 = vpack.c.b16 %v1192, %v1191
  %v1429 = vpack.c.b16 %v1194, %v1193
  %v1430 = vpack.c.b16 %v1196, %v1195
  %v1431 = vpack.c.b16 %v1198, %v1197
  %v1432 = vpack.c.b16 %v1200, %v1199
  %v1433 = vpack.c.b16 %v1202, %v1201
  %v1434 = vpack.c.b16 %v1204, %v1203
  %v1435 = vpack.c.b16 %v1206, %v1205
  %v1436 = vpack.c.b16 %v1208, %v1207
  %v1437 = vpack.c.b16 %v1210, %v1209
  %v1438 = vpack.c.b16 %v1212, %v1211
  %v1439 = vpack.c.b16 %v1214, %v1213
  %v1440 = vpack.c.b16 %v1216, %v1215
  %v1441 = vpack.c.b16 %v1218, %v1217
  %v1442 = vpack.c.b16 %v1220, %v1219
  %v1443 = vpack.c.b16 %v1222, %v1221
  %v1444 = vpack.c.b16 %v1224, %v1223
  %v1445 = vpack.c.b16 %v1226, %v1225
  %v1446 = vpack.c.b16 %v1228, %v1227
  %v1447 = vpack.c.b16 %v1230, %v1229
  %v1448 = vpack.c.b16 %v1232, %v1231
  %v1449 = vpack.c.b16 %v1234, %v1233
  %v1450 = vpack.c.b16 %v1236, %v1235
  %v1451 = vpack.c.b16 %v1238, %v1237
  %v1452 = vpack.c.b16 %v1240, %v1239
  %v1453 = vpack.c.b16 %v1242, %v1241
  %v1454 = vpack.c.b16 %v1244, %v1243
  %v1455 = vpack.c.b16 %v1246, %v1245
  %v1456 = vpack.c.b16 %v1248, %v1247
  %v1457 = vpack.c.b16 %v1250, %v1249
  %v1458 = vpack.c.b16 %v1252, %v1251
  %v1459 = vpack.c.b16 %v1254, %v1253
  %v1460 = vpack.c.b16 %v1256, %v1255
  %v1461 = vpack.c.b16 %v1258, %v1257
  %v1462 = vpack.c.b16 %v1260, %v1259
  %v1463 = vpack.c.b16 %v1262, %v1261
  %v1464 = vpack.c.b16 %v1264, %v1263
  %v1465 = vpack.c.b16 %v1266, %v1265
  %v1466 = vpack.c.b16 %v1268, %v1267
  %v1467 = vpack.c.b16 %v1270, %v1269
  %v1468 = vpack.c.b16 %v1272, %v1271
  %v1469 = vpack.c.b16 %v1274, %v1273
  %v1470 = vpack.c.b16 %v1276, %v1275
  %v1471 = vpack.c.b16 %v1278, %v1277
  %v1472 = vpack.c.b16 %v1280, %v1279
  %1665 = vmatpush.bf16.msra.mxu0 %v1288
  %1666 = vmatpush.bf16.msra.mxu0 %v1287
  %1667 = vmatpush.bf16.msra.mxu0 %v1286
  %1668 = vmatpush.bf16.msra.mxu0 %v1285
  %1669 = vmatpush.bf16.msra.mxu0 %v1284
  %1670 = vmatpush.bf16.msra.mxu0 %v1283
  %1671 = vmatpush.bf16.msra.mxu0 %v1282
  %1672 = vmatpush.bf16.msra.mxu0 %v1281
  %1673 = vmatmul.bf16.gmra.mxu0 %v465
  %v1674 = vpop.f32.mrf.mxu0
  %v1675 = vadd.f32 %v427, %v1674
  %v1676 = vpop.f32.mrf.mxu0
  %1677 = vdwg.mxu0
  %1678 = vmatpush.bf16.msra.mxu0 %v1296
  %1679 = vmatpush.bf16.msra.mxu0 %v1295
  %1680 = vmatpush.bf16.msra.mxu0 %v1294
  %1681 = vmatpush.bf16.msra.mxu0 %v1293
  %1682 = vmatpush.bf16.msra.mxu0 %v1292
  %1683 = vmatpush.bf16.msra.mxu0 %v1291
  %1684 = vmatpush.bf16.msra.mxu0 %v1290
  %1685 = vmatpush.bf16.msra.mxu0 %v1289
  %1686 = vmatmul.bf16.gmra.mxu0 %v466
  %v1687 = vpop.f32.mrf.mxu0
  %v1688 = vadd.f32 %v1675, %v1687
  %v1689 = vpop.f32.mrf.mxu0
  %1690 = vdwg.mxu0
  %1691 = vmatpush.bf16.msra.mxu0 %v1304
  %1692 = vmatpush.bf16.msra.mxu0 %v1303
  %1693 = vmatpush.bf16.msra.mxu0 %v1302
  %1694 = vmatpush.bf16.msra.mxu0 %v1301
  %1695 = vmatpush.bf16.msra.mxu0 %v1300
  %1696 = vmatpush.bf16.msra.mxu0 %v1299
  %1697 = vmatpush.bf16.msra.mxu0 %v1298
  %1698 = vmatpush.bf16.msra.mxu0 %v1297
  %1699 = vmatmul.bf16.gmra.mxu0 %v467
  %v1700 = vpop.f32.mrf.mxu0
  %v1701 = vadd.f32 %v1688, %v1700
  %v1702 = vpop.f32.mrf.mxu0
  %1703 = vdwg.mxu0
  %1704 = vmatpush.bf16.msra.mxu0 %v1312
  %1705 = vmatpush.bf16.msra.mxu0 %v1311
  %1706 = vmatpush.bf16.msra.mxu0 %v1310
  %1707 = vmatpush.bf16.msra.mxu0 %v1309
  %1708 = vmatpush.bf16.msra.mxu0 %v1308
  %1709 = vmatpush.bf16.msra.mxu0 %v1307
  %1710 = vmatpush.bf16.msra.mxu0 %v1306
  %1711 = vmatpush.bf16.msra.mxu0 %v1305
  %1712 = vmatmul.bf16.gmra.mxu0 %v468
  %v1713 = vpop.f32.mrf.mxu0
  %v1714 = vadd.f32 %v1701, %v1713
  %v1715 = vpop.f32.mrf.mxu0
  %1716 = vdwg.mxu0
  %1717 = vmatpush.bf16.msra.mxu0 %v1320
  %1718 = vmatpush.bf16.msra.mxu0 %v1319
  %1719 = vmatpush.bf16.msra.mxu0 %v1318
  %1720 = vmatpush.bf16.msra.mxu0 %v1317
  %1721 = vmatpush.bf16.msra.mxu0 %v1316
  %1722 = vmatpush.bf16.msra.mxu0 %v1315
  %1723 = vmatpush.bf16.msra.mxu0 %v1314
  %1724 = vmatpush.bf16.msra.mxu0 %v1313
  %1725 = vmatmul.bf16.gmra.mxu0 %v469
  %v1726 = vpop.f32.mrf.mxu0
  %v1727 = vadd.f32 %v1714, %v1726
  %v1728 = vpop.f32.mrf.mxu0
  %1729 = vdwg.mxu0
  %1730 = vmatpush.bf16.msra.mxu0 %v1328
  %1731 = vmatpush.bf16.msra.mxu0 %v1327
  %1732 = vmatpush.bf16.msra.mxu0 %v1326
  %1733 = vmatpush.bf16.msra.mxu0 %v1325
  %1734 = vmatpush.bf16.msra.mxu0 %v1324
  %1735 = vmatpush.bf16.msra.mxu0 %v1323
  %1736 = vmatpush.bf16.msra.mxu0 %v1322
  %1737 = vmatpush.bf16.msra.mxu0 %v1321
  %1738 = vmatmul.bf16.gmra.mxu0 %v470
  %v1739 = vpop.f32.mrf.mxu0
  %v1740 = vadd.f32 %v1727, %v1739
  %v1741 = vpop.f32.mrf.mxu0
  %1742 = vdwg.mxu0
  %1743 = vmatpush.bf16.msra.mxu0 %v1336
  %1744 = vmatpush.bf16.msra.mxu0 %v1335
  %1745 = vmatpush.bf16.msra.mxu0 %v1334
  %1746 = vmatpush.bf16.msra.mxu0 %v1333
  %1747 = vmatpush.bf16.msra.mxu0 %v1332
  %1748 = vmatpush.bf16.msra.mxu0 %v1331
  %1749 = vmatpush.bf16.msra.mxu0 %v1330
  %1750 = vmatpush.bf16.msra.mxu0 %v1329
  %1751 = vmatmul.bf16.gmra.mxu0 %v471
  %v1752 = vpop.f32.mrf.mxu0
  %v1753 = vadd.f32 %v1740, %v1752
  %v1754 = vpop.f32.mrf.mxu0
  %1755 = vdwg.mxu0
  %1756 = vmatpush.bf16.msra.mxu0 %v1344
  %1757 = vmatpush.bf16.msra.mxu0 %v1343
  %1758 = vmatpush.bf16.msra.mxu0 %v1342
  %1759 = vmatpush.bf16.msra.mxu0 %v1341
  %1760 = vmatpush.bf16.msra.mxu0 %v1340
  %1761 = vmatpush.bf16.msra.mxu0 %v1339
  %1762 = vmatpush.bf16.msra.mxu0 %v1338
  %1763 = vmatpush.bf16.msra.mxu0 %v1337
  %1764 = vmatmul.bf16.gmra.mxu0 %v472
  %v1765 = vpop.f32.mrf.mxu0
  %v1766 = vadd.f32 %v1753, %v1765
  %v1767 = vpop.f32.mrf.mxu0
  %1768 = vdwg.mxu0
  %1769 = vmatpush.bf16.msra.mxu0 %v1352
  %1770 = vmatpush.bf16.msra.mxu0 %v1351
  %1771 = vmatpush.bf16.msra.mxu0 %v1350
  %1772 = vmatpush.bf16.msra.mxu0 %v1349
  %1773 = vmatpush.bf16.msra.mxu0 %v1348
  %1774 = vmatpush.bf16.msra.mxu0 %v1347
  %1775 = vmatpush.bf16.msra.mxu0 %v1346
  %1776 = vmatpush.bf16.msra.mxu0 %v1345
  %1777 = vmatmul.bf16.gmra.mxu0 %v473
  %v1778 = vpop.f32.mrf.mxu0
  %v1779 = vadd.f32 %v1766, %v1778
  %v1780 = vpop.f32.mrf.mxu0
  %1781 = vdwg.mxu0
  %1782 = vmatpush.bf16.msra.mxu0 %v1360
  %1783 = vmatpush.bf16.msra.mxu0 %v1359
  %1784 = vmatpush.bf16.msra.mxu0 %v1358
  %1785 = vmatpush.bf16.msra.mxu0 %v1357
  %1786 = vmatpush.bf16.msra.mxu0 %v1356
  %1787 = vmatpush.bf16.msra.mxu0 %v1355
  %1788 = vmatpush.bf16.msra.mxu0 %v1354
  %1789 = vmatpush.bf16.msra.mxu0 %v1353
  %1790 = vmatmul.bf16.gmra.mxu0 %v474
  %v1791 = vpop.f32.mrf.mxu0
  %v1792 = vadd.f32 %v1779, %v1791
  %v1793 = vpop.f32.mrf.mxu0
  %1794 = vdwg.mxu0
  %1795 = vmatpush.bf16.msra.mxu0 %v1368
  %1796 = vmatpush.bf16.msra.mxu0 %v1367
  %1797 = vmatpush.bf16.msra.mxu0 %v1366
  %1798 = vmatpush.bf16.msra.mxu0 %v1365
  %1799 = vmatpush.bf16.msra.mxu0 %v1364
  %1800 = vmatpush.bf16.msra.mxu0 %v1363
  %1801 = vmatpush.bf16.msra.mxu0 %v1362
  %1802 = vmatpush.bf16.msra.mxu0 %v1361
  %1803 = vmatmul.bf16.gmra.mxu0 %v475
  %v1804 = vpop.f32.mrf.mxu0
  %v1805 = vadd.f32 %v1792, %v1804
  %v1806 = vpop.f32.mrf.mxu0
  %1807 = vdwg.mxu0
  %1808 = vmatpush.bf16.msra.mxu0 %v1376
  %1809 = vmatpush.bf16.msra.mxu0 %v1375
  %1810 = vmatpush.bf16.msra.mxu0 %v1374
  %1811 = vmatpush.bf16.msra.mxu0 %v1373
  %1812 = vmatpush.bf16.msra.mxu0 %v1372
  %1813 = vmatpush.bf16.msra.mxu0 %v1371
  %1814 = vmatpush.bf16.msra.mxu0 %v1370
  %1815 = vmatpush.bf16.msra.mxu0 %v1369
  %1816 = vmatmul.bf16.gmra.mxu0 %v476
  %v1817 = vpop.f32.mrf.mxu0
  %v1818 = vadd.f32 %v1805, %v1817
  %v1819 = vpop.f32.mrf.mxu0
  %1820 = vdwg.mxu0
  %1821 = vmatpush.bf16.msra.mxu0 %v1384
  %1822 = vmatpush.bf16.msra.mxu0 %v1383
  %1823 = vmatpush.bf16.msra.mxu0 %v1382
  %1824 = vmatpush.bf16.msra.mxu0 %v1381
  %1825 = vmatpush.bf16.msra.mxu0 %v1380
  %1826 = vmatpush.bf16.msra.mxu0 %v1379
  %1827 = vmatpush.bf16.msra.mxu0 %v1378
  %1828 = vmatpush.bf16.msra.mxu0 %v1377
  %1829 = vmatmul.bf16.gmra.mxu0 %v477
  %v1830 = vpop.f32.mrf.mxu0
  %v1831 = vadd.f32 %v1818, %v1830
  %v1832 = vpop.f32.mrf.mxu0
  %1833 = vdwg.mxu0
  %1834 = vmatpush.bf16.msra.mxu0 %v1392
  %1835 = vmatpush.bf16.msra.mxu0 %v1391
  %1836 = vmatpush.bf16.msra.mxu0 %v1390
  %1837 = vmatpush.bf16.msra.mxu0 %v1389
  %1838 = vmatpush.bf16.msra.mxu0 %v1388
  %1839 = vmatpush.bf16.msra.mxu0 %v1387
  %1840 = vmatpush.bf16.msra.mxu0 %v1386
  %1841 = vmatpush.bf16.msra.mxu0 %v1385
  %1842 = vmatmul.bf16.gmra.mxu0 %v478
  %v1843 = vpop.f32.mrf.mxu0
  %v1844 = vadd.f32 %v1831, %v1843
  %v1845 = vpop.f32.mrf.mxu0
  %1846 = vdwg.mxu0
  %1847 = vmatpush.bf16.msra.mxu0 %v1400
  %1848 = vmatpush.bf16.msra.mxu0 %v1399
  %1849 = vmatpush.bf16.msra.mxu0 %v1398
  %1850 = vmatpush.bf16.msra.mxu0 %v1397
  %1851 = vmatpush.bf16.msra.mxu0 %v1396
  %1852 = vmatpush.bf16.msra.mxu0 %v1395
  %1853 = vmatpush.bf16.msra.mxu0 %v1394
  %1854 = vmatpush.bf16.msra.mxu0 %v1393
  %1855 = vmatmul.bf16.gmra.mxu0 %v479
  %v1856 = vpop.f32.mrf.mxu0
  %v1857 = vadd.f32 %v1844, %v1856
  %v1858 = vpop.f32.mrf.mxu0
  %1859 = vdwg.mxu0
  %1860 = vmatpush.bf16.msra.mxu0 %v1408
  %1861 = vmatpush.bf16.msra.mxu0 %v1407
  %1862 = vmatpush.bf16.msra.mxu0 %v1406
  %1863 = vmatpush.bf16.msra.mxu0 %v1405
  %1864 = vmatpush.bf16.msra.mxu0 %v1404
  %1865 = vmatpush.bf16.msra.mxu0 %v1403
  %1866 = vmatpush.bf16.msra.mxu0 %v1402
  %1867 = vmatpush.bf16.msra.mxu0 %v1401
  %1868 = vmatmul.bf16.gmra.mxu0 %v480
  %v1869 = vpop.f32.mrf.mxu0
  %v1870 = vadd.f32 %v1857, %v1869
  %v1871 = vpop.f32.mrf.mxu0
  %1872 = vdwg.mxu0
  %1873 = vmatpush.bf16.msra.mxu0 %v1416
  %1874 = vmatpush.bf16.msra.mxu0 %v1415
  %1875 = vmatpush.bf16.msra.mxu0 %v1414
  %1876 = vmatpush.bf16.msra.mxu0 %v1413
  %1877 = vmatpush.bf16.msra.mxu0 %v1412
  %1878 = vmatpush.bf16.msra.mxu0 %v1411
  %1879 = vmatpush.bf16.msra.mxu0 %v1410
  %1880 = vmatpush.bf16.msra.mxu0 %v1409
  %1881 = vmatmul.bf16.gmra.mxu0 %v481
  %v1882 = vpop.f32.mrf.mxu0
  %v1883 = vadd.f32 %v1870, %v1882
  %v1884 = vpop.f32.mrf.mxu0
  %1885 = vdwg.mxu0
  %1886 = vmatpush.bf16.msra.mxu0 %v1424
  %1887 = vmatpush.bf16.msra.mxu0 %v1423
  %1888 = vmatpush.bf16.msra.mxu0 %v1422
  %1889 = vmatpush.bf16.msra.mxu0 %v1421
  %1890 = vmatpush.bf16.msra.mxu0 %v1420
  %1891 = vmatpush.bf16.msra.mxu0 %v1419
  %1892 = vmatpush.bf16.msra.mxu0 %v1418
  %1893 = vmatpush.bf16.msra.mxu0 %v1417
  %1894 = vmatmul.bf16.gmra.mxu0 %v482
  %v1895 = vpop.f32.mrf.mxu0
  %v1896 = vadd.f32 %v1883, %v1895
  %v1897 = vpop.f32.mrf.mxu0
  %1898 = vdwg.mxu0
  %1899 = vmatpush.bf16.msra.mxu0 %v1432
  %1900 = vmatpush.bf16.msra.mxu0 %v1431
  %1901 = vmatpush.bf16.msra.mxu0 %v1430
  %1902 = vmatpush.bf16.msra.mxu0 %v1429
  %1903 = vmatpush.bf16.msra.mxu0 %v1428
  %1904 = vmatpush.bf16.msra.mxu0 %v1427
  %1905 = vmatpush.bf16.msra.mxu0 %v1426
  %1906 = vmatpush.bf16.msra.mxu0 %v1425
  %1907 = vmatmul.bf16.gmra.mxu0 %v483
  %v1908 = vpop.f32.mrf.mxu0
  %v1909 = vadd.f32 %v1896, %v1908
  %v1910 = vpop.f32.mrf.mxu0
  %1911 = vdwg.mxu0
  %1912 = vmatpush.bf16.msra.mxu0 %v1440
  %1913 = vmatpush.bf16.msra.mxu0 %v1439
  %1914 = vmatpush.bf16.msra.mxu0 %v1438
  %1915 = vmatpush.bf16.msra.mxu0 %v1437
  %1916 = vmatpush.bf16.msra.mxu0 %v1436
  %1917 = vmatpush.bf16.msra.mxu0 %v1435
  %1918 = vmatpush.bf16.msra.mxu0 %v1434
  %1919 = vmatpush.bf16.msra.mxu0 %v1433
  %1920 = vmatmul.bf16.gmra.mxu0 %v484
  %v1921 = vpop.f32.mrf.mxu0
  %v1922 = vadd.f32 %v1909, %v1921
  %v1923 = vpop.f32.mrf.mxu0
  %1924 = vdwg.mxu0
  %1925 = vmatpush.bf16.msra.mxu0 %v1448
  %1926 = vmatpush.bf16.msra.mxu0 %v1447
  %1927 = vmatpush.bf16.msra.mxu0 %v1446
  %1928 = vmatpush.bf16.msra.mxu0 %v1445
  %1929 = vmatpush.bf16.msra.mxu0 %v1444
  %1930 = vmatpush.bf16.msra.mxu0 %v1443
  %1931 = vmatpush.bf16.msra.mxu0 %v1442
  %1932 = vmatpush.bf16.msra.mxu0 %v1441
  %1933 = vmatmul.bf16.gmra.mxu0 %v485
  %v1934 = vpop.f32.mrf.mxu0
  %v1935 = vadd.f32 %v1922, %v1934
  %v1936 = vpop.f32.mrf.mxu0
  %1937 = vdwg.mxu0
  %1938 = vmatpush.bf16.msra.mxu0 %v1456
  %1939 = vmatpush.bf16.msra.mxu0 %v1455
  %1940 = vmatpush.bf16.msra.mxu0 %v1454
  %1941 = vmatpush.bf16.msra.mxu0 %v1453
  %1942 = vmatpush.bf16.msra.mxu0 %v1452
  %1943 = vmatpush.bf16.msra.mxu0 %v1451
  %1944 = vmatpush.bf16.msra.mxu0 %v1450
  %1945 = vmatpush.bf16.msra.mxu0 %v1449
  %1946 = vmatmul.bf16.gmra.mxu0 %v486
  %v1947 = vpop.f32.mrf.mxu0
  %v1948 = vadd.f32 %v1935, %v1947
  %v1949 = vpop.f32.mrf.mxu0
  %1950 = vdwg.mxu0
  %1951 = vmatpush.bf16.msra.mxu0 %v1464
  %1952 = vmatpush.bf16.msra.mxu0 %v1463
  %1953 = vmatpush.bf16.msra.mxu0 %v1462
  %1954 = vmatpush.bf16.msra.mxu0 %v1461
  %1955 = vmatpush.bf16.msra.mxu0 %v1460
  %1956 = vmatpush.bf16.msra.mxu0 %v1459
  %1957 = vmatpush.bf16.msra.mxu0 %v1458
  %1958 = vmatpush.bf16.msra.mxu0 %v1457
  %1959 = vmatmul.bf16.gmra.mxu0 %v487
  %v1960 = vpop.f32.mrf.mxu0
  %v1961 = vadd.f32 %v1948, %v1960
  %v1962 = vpop.f32.mrf.mxu0
  %1963 = vdwg.mxu0
  %1964 = vmatpush.bf16.msra.mxu0 %v1472
  %1965 = vmatpush.bf16.msra.mxu0 %v1471
  %1966 = vmatpush.bf16.msra.mxu0 %v1470
  %1967 = vmatpush.bf16.msra.mxu0 %v1469
  %1968 = vmatpush.bf16.msra.mxu0 %v1468
  %1969 = vmatpush.bf16.msra.mxu0 %v1467
  %1970 = vmatpush.bf16.msra.mxu0 %v1466
  %1971 = vmatpush.bf16.msra.mxu0 %v1465
  %1972 = vmatmul.bf16.gmra.mxu0 %v488
  %v1973 = vpop.f32.mrf.mxu0
  %v1974 = vadd.f32 %v1961, %v1973
  %v1975 = vpop.f32.mrf.mxu0
  %1976 = vdwg.mxu0
  %v1977 = vmax.f32 %v1974, 0.0
  %v1978 = vpack.c.bf16 %v1977, %v1977
  %v1979 = vld [vmem:[%s3] sm:$0xf]
  %v1980 = vld [vmem:[%s3 + $0x4] sm:$0xf]
  %v1981 = vld [vmem:[%s3 + $0x8] sm:$0xf]
  %v1982 = vld [vmem:[%s3 + $0xc] sm:$0xf]
  %v1983 = vld [vmem:[%s3 + $0x10] sm:$0xf]
  %v1984 = vld [vmem:[%s3 + $0x14] sm:$0xf]
  %v1985 = vld [vmem:[%s3 + $0x18] sm:$0xf]
  %v1986 = vld [vmem:[%s3 + $0x1c] sm:$0xf]
  %v1987 = vld [vmem:[%s4] sm:$0x1]
  %v1989 = vperm.slane %v1987, 0
  %v1999 = vunpack.c.l.b16 %v1979
  %v2000 = vunpack.c.l.b16 %v1980
  %v2001 = vunpack.c.l.b16 %v1981
  %v2002 = vunpack.c.l.b16 %v1982
  %v2003 = vunpack.c.l.b16 %v1983
  %v2004 = vunpack.c.l.b16 %v1984
  %v2005 = vunpack.c.l.b16 %v1985
  %v2006 = vunpack.c.l.b16 %v1986
  %v2007 = vpack.c.b16 %v2000, %v1999
  %v2008 = vpack.c.b16 %v2002, %v2001
  %v2009 = vpack.c.b16 %v2004, %v2003
  %v2010 = vpack.c.b16 %v2006, %v2005
  %vm2015 = vcmask 523264
  %v2017 = vsel %vm2015, %v1978, 0
  %2019 = vmatpush.bf16.msra.mxu0 0
  %2020 = vmatpush.bf16.msra.mxu0 0
  %2021 = vmatpush.bf16.msra.mxu0 0
  %2022 = vmatpush.bf16.msra.mxu0 0
  %2023 = vmatpush.bf16.msra.mxu0 %v2010
  %2024 = vmatpush.bf16.msra.mxu0 %v2009
  %2025 = vmatpush.bf16.msra.mxu0 %v2008
  %2026 = vmatpush.bf16.msra.mxu0 %v2007
  %2027 = vmatmul.bf16.gmra.mxu0 %v2017
  %v2028 = vpop.f32.mrf.mxu0
  %v2029 = vadd.f32 %v1989, %v2028
  %v2030 = vpop.f32.mrf.mxu0
  %2031 = vdwg.mxu0
  %v2032 = vmax.f32 %v2029, 0.0
  %v2033 = vpack.c.bf16 %v2032, %v2032
  %v2034 = vld [vmem:[%s5] sm:$0xf]
  %v2035 = vld [vmem:[%s5 + $0x4] sm:$0xf]
  %v2036 = vld [vmem:[%s5 + $0x8] sm:$0xf]
  %v2037 = vld [vmem:[%s5 + $0xc] sm:$0xf]
  %v2038 = vld [vmem:[%s5 + $0x10] sm:$0xf]
  %v2039 = vld [vmem:[%s5 + $0x14] sm:$0xf]
  %v2040 = vld [vmem:[%s5 + $0x18] sm:$0xf]
  %v2041 = vld [vmem:[%s5 + $0x1c] sm:$0xf]
  %v2042 = vld [vmem:[%s5 + $0x20] sm:$0xf]
  %v2043 = vld [vmem:[%s5 + $0x24] sm:$0xf]
  %v2044 = vld [vmem:[%s5 + $0x28] sm:$0xf]
  %v2045 = vld [vmem:[%s5 + $0x2c] sm:$0xf]
  %v2046 = vld [vmem:[%s5 + $0x30] sm:$0xf]
  %v2047 = vld [vmem:[%s5 + $0x34] sm:$0xf]
  %v2048 = vld [vmem:[%s5 + $0x38] sm:$0xf]
  %v2049 = vld [vmem:[%s5 + $0x3c] sm:$0xf]
  %v2050 = vld [vmem:[%s6] sm:$0x1]
  %v2052 = vperm.slane %v2050, 0
  %v2070 = vunpack.c.l.b16 %v2034
  %v2071 = vunpack.c.l.b16 %v2035
  %v2072 = vunpack.c.l.b16 %v2036
  %v2073 = vunpack.c.l.b16 %v2037
  %v2074 = vunpack.c.l.b16 %v2038
  %v2075 = vunpack.c.l.b16 %v2039
  %v2076 = vunpack.c.l.b16 %v2040
  %v2077 = vunpack.c.l.b16 %v2041
  %v2078 = vunpack.c.l.b16 %v2042
  %v2079 = vunpack.c.l.b16 %v2043
  %v2080 = vunpack.c.l.b16 %v2044
  %v2081 = vunpack.c.l.b16 %v2045
  %v2082 = vunpack.c.l.b16 %v2046
  %v2083 = vunpack.c.l.b16 %v2047
  %v2084 = vunpack.c.l.b16 %v2048
  %v2085 = vunpack.c.l.b16 %v2049
  %v2086 = vpack.c.b16 %v2071, %v2070
  %v2087 = vpack.c.b16 %v2073, %v2072
  %v2088 = vpack.c.b16 %v2075, %v2074
  %v2089 = vpack.c.b16 %v2077, %v2076
  %v2090 = vpack.c.b16 %v2079, %v2078
  %v2091 = vpack.c.b16 %v2081, %v2080
  %v2092 = vpack.c.b16 %v2083, %v2082
  %v2093 = vpack.c.b16 %v2085, %v2084
  %2102 = vmatpush.bf16.msra.mxu0 %v2093
  %2103 = vmatpush.bf16.msra.mxu0 %v2092
  %2104 = vmatpush.bf16.msra.mxu0 %v2091
  %2105 = vmatpush.bf16.msra.mxu0 %v2090
  %2106 = vmatpush.bf16.msra.mxu0 %v2089
  %2107 = vmatpush.bf16.msra.mxu0 %v2088
  %2108 = vmatpush.bf16.msra.mxu0 %v2087
  %2109 = vmatpush.bf16.msra.mxu0 %v2086
  %2110 = vmatmul.bf16.gmra.mxu0 %v2033
  %v2111 = vpop.f32.mrf.mxu0
  %v2112 = vadd.f32 %v2052, %v2111
  %v2113 = vpop.f32.mrf.mxu0
  %2114 = vdwg.mxu0
  %2115 = vst [vmem:[%s7] sm:$0xff] %v2032
  %2116 = vst [vmem:[%s8] sm:$0xff] %v2112
  // Predicated region
  $region30: #{first_model_omniglot_forward.1} parent=0 // pred_check
    _
  $region31: #{first_model_omniglot_forward.1} parent=0 // pred_check_branch
    %2118 = sbr.rel (0) target = $region33
  $region32: #{first_model_omniglot_forward.1} parent=0 // pred_region
    _
  $region33: #{first_model_omniglot_forward.1} parent=0 // pred_fallthru
    _
  // Predicated region
  $region34: #{first_model_omniglot_forward.1} parent=0 // pred_check
    _
  $region35: #{first_model_omniglot_forward.1} parent=0 // pred_check_branch
    %2120 = sbr.rel (0) target = $region37
  $region36: #{first_model_omniglot_forward.1} parent=0 // pred_region
    _
  $region37: #{first_model_omniglot_forward.1} parent=0 // pred_fallthru
    _
  // Predicated region
  $region38: #{first_model_omniglot_forward.1} parent=0 // pred_check
    _
  $region39: #{first_model_omniglot_forward.1} parent=0 // pred_check_branch
    %2122 = sbr.rel (0) target = $region41
  $region40: #{first_model_omniglot_forward.1} parent=0 // pred_region
    _
  $region41: #{first_model_omniglot_forward.1} parent=0 // pred_fallthru
    _
  // Predicated region
  $region42: #{first_model_omniglot_forward.1} parent=0 // pred_check
    _
  $region43: #{first_model_omniglot_forward.1} parent=0 // pred_check_branch
    %2124 = sbr.rel (0) target = $region45
  $region44: #{first_model_omniglot_forward.1} parent=0 // pred_region
    _
  $region45: #{first_model_omniglot_forward.1} parent=0 // pred_fallthru
    _

</llo_original>
